<compile_context>
chip_gen: v7x
topology: tpu7x:2x2x1
jax: 0.10.0
libtpu: 0.0.40
codegen_flags: <defaults>
</compile_context>

<pallas_src>
import jax
import jax.numpy as jnp
from jax import lax
from jax.experimental import pallas as pl
from jax.experimental.pallas import tpu as pltpu

# ---------------- synthetic Ms2VecConfig.conv values (small, deterministic) ----------------
BATCH = 2
IN_DIM = 16            # input length L
CH_IN = 4              # channels_in
CH_MED = 8             # channels_med_1
CH_OUT = 8             # channels_out
CONV_K1, CONV_S1, CONV_P1 = 3, 1, 1
CONV_K2, CONV_S2, CONV_P2 = 3, 1, 1
CONV_DIL = 1
POOL_K, POOL_S, POOL_P, POOL_DIL = 2, 2, 0, 1
FC_DIM_1 = 32
EMB_DIM = 16
BN_EPS = 1e-5
LANE = 128             # every matmul OUTPUT dim padded to a full lane width (lane-dense)


def conv_out_dim(l_in, kernel, stride, padding, dilation):
    return (l_in + 2 * padding - dilation * (kernel - 1) - 1) // stride + 1


OUT_1 = conv_out_dim(IN_DIM, CONV_K1, CONV_S1, CONV_P1, CONV_DIL)   # 16
OUT_2 = conv_out_dim(OUT_1, POOL_K, POOL_S, POOL_P, POOL_DIL)       # 8
OUT_3 = conv_out_dim(OUT_2, CONV_K2, CONV_S2, CONV_P2, CONV_DIL)    # 8
OUT_4 = conv_out_dim(OUT_3, POOL_K, POOL_S, POOL_P, POOL_DIL)       # 4
CNN_OUT = CH_OUT * OUT_4                                            # 32

CIN_PAD = 8            # conv1 contraction dim: 4 real channels padded to 8 (sublane multiple)
SEG1 = 24              # per-sample rows of the conv1 input (>= 16+2*pad = 18, multiple of 8)
SEG2 = 16              # per-sample rows of the conv2 input (>= 8+2*pad = 10, multiple of 8)


# ---------------- single fused Pallas kernel (one invocation = whole batch) ----------------
def _fused_kernel(x_ref, w1_ref, w2_ref, wfc1_ref, wfc2_ref, sh_ref, o_ref,
                  h1, p1, h2, p2):
    f32, bf16 = jnp.float32, jnp.bfloat16

    # ---- conv1 (+ folded BN1) + relu: per-tap shifted matmuls, both samples ----
    for b in range(BATCH):
        acc = jnp.zeros((OUT_1, LANE), f32)
        for t in range(CONV_K1):
            acc += jnp.dot(x_ref[pl.ds(b * SEG1 + t, OUT_1), :].astype(bf16),
                           w1_ref[t], preferred_element_type=f32)
        h1[pl.ds(b * OUT_1, OUT_1), :] = jax.nn.relu(acc + sh_ref[0:1, :])

    # ---- pool1 (k=2, s=2): max of even/odd rows -> conv2 input; only pad rows are zeroed ----
    for b in range(BATCH):
        pooled = jnp.maximum(h1[pl.ds(b * OUT_1 + 0, OUT_2, stride=POOL_S), :],
                             h1[pl.ds(b * OUT_1 + 1, OUT_2, stride=POOL_S), :])
        p1[b * SEG2:b * SEG2 + 1, :] = jnp.zeros((1, CH_MED), f32)
        p1[b * SEG2 + CONV_P2 + OUT_2:b * SEG2 + CONV_P2 + OUT_2 + 1, :] = (
            jnp.zeros((1, CH_MED), f32))
        p1[pl.ds(b * SEG2 + CONV_P2, OUT_2), :] = pooled[:, :CH_MED]

    # ---- conv2 (+ folded BN2) + relu ----
    for b in range(BATCH):
        acc = jnp.zeros((OUT_3, LANE), f32)
        for t in range(CONV_K2):
            acc += jnp.dot(p1[pl.ds(b * SEG2 + t, OUT_3), :].astype(bf16),
                           w2_ref[t], preferred_element_type=f32)
        h2[pl.ds(b * OUT_3, OUT_3), :] = jax.nn.relu(acc + sh_ref[1:2, :])

    # ---- pool2 ----
    for b in range(BATCH):
        pooled = jnp.maximum(h2[pl.ds(b * OUT_3 + 0, OUT_4, stride=POOL_S), :],
                             h2[pl.ds(b * OUT_3 + 1, OUT_4, stride=POOL_S), :])
        p2[pl.ds(b * OUT_4, OUT_4), :] = pooled[:, :CH_OUT]

    # ---- fc1 (+ folded BN3) + relu: one M=BATCH dot per flatten position ----
    acc = jnp.zeros((BATCH, LANE), f32)
    for l in range(OUT_4):
        # rows (l, l + OUT_4): length-position l of sample 0 and sample 1
        lhs = p2[pl.ds(l, BATCH, stride=OUT_4), :].astype(bf16)
        acc += jnp.dot(lhs, wfc1_ref[l], preferred_element_type=f32)
    y = jax.nn.relu(acc + sh_ref[2:3, :])

    # ---- fc2 + bias + tanh ----
    y = jnp.dot(y[:, :FC_DIM_1].astype(bf16), wfc2_ref[...],
                preferred_element_type=f32) + sh_ref[3:4, :]
    o_ref[...] = jnp.tanh(y)


# ---------------- one-time parameter folding / compact packing ----------------
def _pad_cols(a):
    return jnp.pad(a, ((0, 0), (0, LANE - a.shape[1])))


def _pad_vec(v):
    return jnp.pad(v, (0, LANE - v.shape[0]))


def prepare_operands(p):
    """Fold eval-mode BN + biases into compact bf16 weights.  Run ONCE, not per forward."""
    s1 = p["bn1"]["gamma"] / jnp.sqrt(p["bn1"]["var"] + BN_EPS)
    t1 = (p["b1"] - p["bn1"]["mean"]) * s1 + p["bn1"]["beta"]
    s2 = p["bn2"]["gamma"] / jnp.sqrt(p["bn2"]["var"] + BN_EPS)
    t2 = (p["b2"] - p["bn2"]["mean"]) * s2 + p["bn2"]["beta"]
    s3 = p["bn3"]["gamma"] / jnp.sqrt(p["bn3"]["var"] + BN_EPS)
    t3 = (p["b_fc1"] - p["bn3"]["mean"]) * s3 + p["bn3"]["beta"]

    # conv weights: torch (O, I, K) -> per-tap (I, O) with BN scale folded; contraction dim
    # kept compact (padded only to 8 sublanes), output dim padded to 128 lanes.
    w1 = jnp.stack([
        _pad_cols(jnp.pad((p["w1"][:, :, t] * s1[:, None]).T,
                          ((0, CIN_PAD - CH_IN), (0, 0))))
        for t in range(CONV_K1)]).astype(jnp.bfloat16)                     # (3, 8, 128)
    w2 = jnp.stack([
        _pad_cols((p["w2"][:, :, t] * s2[:, None]).T)
        for t in range(CONV_K2)]).astype(jnp.bfloat16)                     # (3, 8, 128)
    # fc1: torch (F, C*OUT_4) with channel-major flatten -> per-length-position (C, F)
    wf1s = p["w_fc1"] * s3[:, None]
    wfc1 = jnp.stack([_pad_cols(wf1s[:, l::OUT_4].T)
                      for l in range(OUT_4)]).astype(jnp.bfloat16)         # (4, 8, 128)
    wfc2 = _pad_cols(p["w_fc2"].T).astype(jnp.bfloat16)                    # (32, 128)
    shifts = jnp.stack([_pad_vec(t1), _pad_vec(t2), _pad_vec(t3),
                        _pad_vec(p["b_fc2"])]).astype(jnp.float32)         # (4, 128)
    return w1, w2, wfc1, wfc2, shifts


@jax.jit
def conv1d_forward(x, w1, w2, wfc1, wfc2, shifts):
    # NCL -> (B, L, C); zero-pad the length for conv1 (left pad 1, zeros up to SEG1) and
    # channels 4 -> 8; stack samples along sublanes so the whole batch is one grid step.
    xp = jnp.transpose(x, (0, 2, 1))
    xp = jnp.pad(xp, ((0, 0),
                      (CONV_P1, SEG1 - IN_DIM - CONV_P1),
                      (0, CIN_PAD - CH_IN)))
    xp = xp.reshape(BATCH * SEG1, CIN_PAD)                                 # (48, 8) f32

    out = pl.pallas_call(
        _fused_kernel,
        out_shape=jax.ShapeDtypeStruct((BATCH, LANE), jnp.float32),
        grid=(1,),
        in_specs=[
            pl.BlockSpec((BATCH * SEG1, CIN_PAD), lambda i: (0, 0)),       # stacked input
            pl.BlockSpec((CONV_K1, CIN_PAD, LANE), lambda i: (0, 0, 0)),   # conv1 taps (compact)
            pl.BlockSpec((CONV_K2, CH_MED, LANE), lambda i: (0, 0, 0)),    # conv2 taps (compact)
            pl.BlockSpec((OUT_4, CH_OUT, LANE), lambda i: (0, 0, 0)),      # fc1 per position
            pl.BlockSpec((FC_DIM_1, LANE), lambda i: (0, 0)),              # fc2 (compact)
            pl.BlockSpec((4, LANE), lambda i: (0, 0)),                     # folded bias/BN shifts
        ],
        out_specs=pl.BlockSpec((BATCH, LANE), lambda i: (0, 0)),           # lane-dense output
        scratch_shapes=[
            pltpu.VMEM((BATCH * OUT_1, LANE), jnp.float32),     # h1: conv1 post-relu
            pltpu.VMEM((BATCH * SEG2, CH_MED), jnp.float32),    # p1: pool1 out (padded conv2 in)
            pltpu.VMEM((BATCH * OUT_3, LANE), jnp.float32),     # h2: conv2 post-relu
            pltpu.VMEM((BATCH * OUT_4, CH_OUT), jnp.float32),   # p2: pool2 out (fc1 input)
        ],
        compiler_params=pltpu.CompilerParams(dimension_semantics=("arbitrary",)),
    )(xp, w1, w2, wfc1, wfc2, shifts)
    return out[:, :EMB_DIM]


# ---------------- deterministic parameter init ----------------
def init_params(key):
    ks = jax.random.split(key, 11)

    def nrm(k, shape, scale=0.1):
        return scale * jax.random.normal(k, shape, jnp.float32)

    def bn_params(k, c):
        k1, k2, k3, k4 = jax.random.split(k, 4)
        return dict(gamma=1.0 + 0.1 * jax.random.normal(k1, (c,), jnp.float32),
                    beta=0.1 * jax.random.normal(k2, (c,), jnp.float32),
                    mean=0.1 * jax.random.normal(k3, (c,), jnp.float32),
                    var=1.0 + 0.1 * jnp.abs(jax.random.normal(k4, (c,), jnp.float32)))

    return dict(
        w1=nrm(ks[0], (CH_MED, CH_IN, CONV_K1)),     # torch Conv1d weight (O, I, K)
        b1=nrm(ks[1], (CH_MED,)),
        bn1=bn_params(ks[2], CH_MED),
        w2=nrm(ks[3], (CH_OUT, CH_MED, CONV_K2)),
        b2=nrm(ks[4], (CH_OUT,)),
        bn2=bn_params(ks[5], CH_OUT),
        w_fc1=nrm(ks[6], (FC_DIM_1, CNN_OUT)),       # torch Linear weight (out, in)
        b_fc1=nrm(ks[7], (FC_DIM_1,)),
        bn3=bn_params(ks[8], FC_DIM_1),
        w_fc2=nrm(ks[9], (EMB_DIM, FC_DIM_1)),
        b_fc2=nrm(ks[10], (EMB_DIM,)),
    )


# ---------------- pure-JAX reference for correctness check ----------------
def reference_forward(x, p):
    def bn_ncl(y, bn):
        return ((y - bn["mean"][None, :, None]) / jnp.sqrt(bn["var"][None, :, None] + BN_EPS)
                * bn["gamma"][None, :, None] + bn["beta"][None, :, None])

    dn = ("NCH", "OIH", "NCH")
    y = lax.conv_general_dilated(x, p["w1"], (CONV_S1,), [(CONV_P1, CONV_P1)], dimension_numbers=dn)
    y = jax.nn.relu(bn_ncl(y + p["b1"][None, :, None], p["bn1"]))
    y = jnp.maximum(y[:, :, 0::2], y[:, :, 1::2])
    y = lax.conv_general_dilated(y, p["w2"], (CONV_S2,), [(CONV_P2, CONV_P2)], dimension_numbers=dn)
    y = jax.nn.relu(bn_ncl(y + p["b2"][None, :, None], p["bn2"]))
    y = jnp.maximum(y[:, :, 0::2], y[:, :, 1::2])
    y = y.reshape(y.shape[0], -1)
    y = y @ p["w_fc1"].T + p["b_fc1"]
    y = (y - p["bn3"]["mean"]) / jnp.sqrt(p["bn3"]["var"] + BN_EPS) * p["bn3"]["gamma"] + p["bn3"]["beta"]
    y = jax.nn.relu(y)
    y = jnp.tanh(y @ p["w_fc2"].T + p["b_fc2"])
    return y


if __name__ == "__main__":
    key = jax.random.PRNGKey(0)
    kx, kp = jax.random.split(key)
    x = jax.random.normal(kx, (BATCH, CH_IN, IN_DIM), jnp.float32)  # NCL, like torch Conv1d input
    params = init_params(kp)

    ops = prepare_operands(params)          # BN/bias folding + packing: runs ONCE, hoisted
    out = jax.block_until_ready(conv1d_forward(x, *ops))
    ref = jax.block_until_ready(reference_forward(x, params))

    assert out.shape == (BATCH, EMB_DIM), out.shape
    assert bool(jnp.all(jnp.isfinite(out)))
    assert bool(jnp.allclose(out, ref, atol=2e-2, rtol=2e-2))
    print("KERNEL_OK")
</pallas_src>

<mosaic_0001>
module attributes {stable_mosaic.version = 11 : i64} {
  func.func @_fused_kernel(%arg0: i32, %arg1: memref<48x8xf32, #tpu.memory_space<vmem>>, %arg2: memref<3x8x128xbf16, #tpu.memory_space<vmem>>, %arg3: memref<3x8x128xbf16, #tpu.memory_space<vmem>>, %arg4: memref<4x8x128xbf16, #tpu.memory_space<vmem>>, %arg5: memref<32x128xbf16, #tpu.memory_space<vmem>>, %arg6: memref<4x128xf32, #tpu.memory_space<vmem>>, %arg7: memref<2x128xf32, #tpu.memory_space<vmem>>, %arg8: memref<32x128xf32, #tpu.memory_space<vmem>>, %arg9: memref<32x8xf32, #tpu.memory_space<vmem>>, %arg10: memref<16x128xf32, #tpu.memory_space<vmem>>, %arg11: memref<8x8xf32, #tpu.memory_space<vmem>>) attributes {dimension_semantics = [#tpu.dimension_semantics<arbitrary>], iteration_bounds = array<i64: 1>, scalar_prefetch = 0 : i64, scratch_operands = 4 : i64, tpu.core_type = #tpu.core_type<tc>, window_params = [{pipeline_mode = #tpu.pipeline_mode<synchronous>, transform_indices = @transform_0, window_bounds = array<i64: 48, 8>}, {pipeline_mode = #tpu.pipeline_mode<synchronous>, transform_indices = @transform_1, window_bounds = array<i64: 3, 8, 128>}, {pipeline_mode = #tpu.pipeline_mode<synchronous>, transform_indices = @transform_2, window_bounds = array<i64: 3, 8, 128>}, {pipeline_mode = #tpu.pipeline_mode<synchronous>, transform_indices = @transform_3, window_bounds = array<i64: 4, 8, 128>}, {pipeline_mode = #tpu.pipeline_mode<synchronous>, transform_indices = @transform_4, window_bounds = array<i64: 32, 128>}, {pipeline_mode = #tpu.pipeline_mode<synchronous>, transform_indices = @transform_5, window_bounds = array<i64: 4, 128>}, {pipeline_mode = #tpu.pipeline_mode<synchronous>, transform_indices = @transform_6, window_bounds = array<i64: 2, 128>}]} {
    %cst = arith.constant 0.000000e+00 : f32
    %0 = vector.broadcast %cst : f32 to vector<16x128xf32>
    %c0 = arith.constant 0 : index
    %c0_0 = arith.constant 0 : index
    %1 = vector.load %arg1[%c0, %c0_0] : memref<48x8xf32, #tpu.memory_space<vmem>>, vector<16x8xf32>
    %2 = arith.truncf %1 : vector<16x8xf32> to vector<16x8xbf16>
    %c0_1 = arith.constant 0 : index
    %c0_2 = arith.constant 0 : index
    %c0_3 = arith.constant 0 : index
    %3 = vector.load %arg2[%c0_1, %c0_2, %c0_3] : memref<3x8x128xbf16, #tpu.memory_space<vmem>>, vector<1x8x128xbf16>
    %4 = vector.shape_cast %3 : vector<1x8x128xbf16> to vector<8x128xbf16>
    %cst_4 = arith.constant dense<0.000000e+00> : vector<16x128xf32>
    %5 = tpu.matmul %2, %4, %cst_4 {dimension_numbers = #tpu.dot_dimension_numbers<[1], [0], [0], [1], [0, 0, 1, 1], [], []>} : vector<16x8xbf16>, vector<8x128xbf16>, vector<16x128xf32> -> vector<16x128xf32>
    %6 = arith.addf %0, %5 : vector<16x128xf32>
    %c1 = arith.constant 1 : index
    %c0_5 = arith.constant 0 : index
    %7 = vector.load %arg1[%c1, %c0_5] : memref<48x8xf32, #tpu.memory_space<vmem>>, vector<16x8xf32>
    %8 = arith.truncf %7 : vector<16x8xf32> to vector<16x8xbf16>
    %c1_6 = arith.constant 1 : index
    %c0_7 = arith.constant 0 : index
    %c0_8 = arith.constant 0 : index
    %9 = vector.load %arg2[%c1_6, %c0_7, %c0_8] : memref<3x8x128xbf16, #tpu.memory_space<vmem>>, vector<1x8x128xbf16>
    %10 = vector.shape_cast %9 : vector<1x8x128xbf16> to vector<8x128xbf16>
    %cst_9 = arith.constant dense<0.000000e+00> : vector<16x128xf32>
    %11 = tpu.matmul %8, %10, %cst_9 {dimension_numbers = #tpu.dot_dimension_numbers<[1], [0], [0], [1], [0, 0, 1, 1], [], []>} : vector<16x8xbf16>, vector<8x128xbf16>, vector<16x128xf32> -> vector<16x128xf32>
    %12 = arith.addf %6, %11 : vector<16x128xf32>
    %c2 = arith.constant 2 : index
    %c0_10 = arith.constant 0 : index
    %13 = vector.load %arg1[%c2, %c0_10] : memref<48x8xf32, #tpu.memory_space<vmem>>, vector<16x8xf32>
    %14 = arith.truncf %13 : vector<16x8xf32> to vector<16x8xbf16>
    %c2_11 = arith.constant 2 : index
    %c0_12 = arith.constant 0 : index
    %c0_13 = arith.constant 0 : index
    %15 = vector.load %arg2[%c2_11, %c0_12, %c0_13] : memref<3x8x128xbf16, #tpu.memory_space<vmem>>, vector<1x8x128xbf16>
    %16 = vector.shape_cast %15 : vector<1x8x128xbf16> to vector<8x128xbf16>
    %cst_14 = arith.constant dense<0.000000e+00> : vector<16x128xf32>
    %17 = tpu.matmul %14, %16, %cst_14 {dimension_numbers = #tpu.dot_dimension_numbers<[1], [0], [0], [1], [0, 0, 1, 1], [], []>} : vector<16x8xbf16>, vector<8x128xbf16>, vector<16x128xf32> -> vector<16x128xf32>
    %18 = arith.addf %12, %17 : vector<16x128xf32>
    %c0_15 = arith.constant 0 : index
    %c0_16 = arith.constant 0 : index
    %19 = vector.load %arg6[%c0_15, %c0_16] : memref<4x128xf32, #tpu.memory_space<vmem>>, vector<1x128xf32>
    %20 = vector.broadcast %19 : vector<1x128xf32> to vector<16x128xf32>
    %21 = arith.addf %18, %20 : vector<16x128xf32>
    %cst_17 = arith.constant 0.000000e+00 : f32
    %22 = vector.broadcast %cst_17 : f32 to vector<16x128xf32>
    %23 = arith.maximumf %21, %22 : vector<16x128xf32>
    %c0_18 = arith.constant 0 : index
    %c0_19 = arith.constant 0 : index
    %24 = vector.load %arg8[%c0_18, %c0_19] : memref<32x128xf32, #tpu.memory_space<vmem>>, vector<16x128xf32>
    tpu.vector_store %arg8[%c0_18, %c0_19], %23 {strides = array<i32>} : memref<32x128xf32, #tpu.memory_space<vmem>>, vector<16x128xf32>,
    %cst_20 = arith.constant 0.000000e+00 : f32
    %25 = vector.broadcast %cst_20 : f32 to vector<16x128xf32>
    %c24 = arith.constant 24 : index
    %c0_21 = arith.constant 0 : index
    %26 = vector.load %arg1[%c24, %c0_21] : memref<48x8xf32, #tpu.memory_space<vmem>>, vector<16x8xf32>
    %27 = arith.truncf %26 : vector<16x8xf32> to vector<16x8xbf16>
    %c0_22 = arith.constant 0 : index
    %c0_23 = arith.constant 0 : index
    %c0_24 = arith.constant 0 : index
    %28 = vector.load %arg2[%c0_22, %c0_23, %c0_24] : memref<3x8x128xbf16, #tpu.memory_space<vmem>>, vector<1x8x128xbf16>
    %29 = vector.shape_cast %28 : vector<1x8x128xbf16> to vector<8x128xbf16>
    %cst_25 = arith.constant dense<0.000000e+00> : vector<16x128xf32>
    %30 = tpu.matmul %27, %29, %cst_25 {dimension_numbers = #tpu.dot_dimension_numbers<[1], [0], [0], [1], [0, 0, 1, 1], [], []>} : vector<16x8xbf16>, vector<8x128xbf16>, vector<16x128xf32> -> vector<16x128xf32>
    %31 = arith.addf %25, %30 : vector<16x128xf32>
    %c25 = arith.constant 25 : index
    %c0_26 = arith.constant 0 : index
    %32 = vector.load %arg1[%c25, %c0_26] : memref<48x8xf32, #tpu.memory_space<vmem>>, vector<16x8xf32>
    %33 = arith.truncf %32 : vector<16x8xf32> to vector<16x8xbf16>
    %c1_27 = arith.constant 1 : index
    %c0_28 = arith.constant 0 : index
    %c0_29 = arith.constant 0 : index
    %34 = vector.load %arg2[%c1_27, %c0_28, %c0_29] : memref<3x8x128xbf16, #tpu.memory_space<vmem>>, vector<1x8x128xbf16>
    %35 = vector.shape_cast %34 : vector<1x8x128xbf16> to vector<8x128xbf16>
    %cst_30 = arith.constant dense<0.000000e+00> : vector<16x128xf32>
    %36 = tpu.matmul %33, %35, %cst_30 {dimension_numbers = #tpu.dot_dimension_numbers<[1], [0], [0], [1], [0, 0, 1, 1], [], []>} : vector<16x8xbf16>, vector<8x128xbf16>, vector<16x128xf32> -> vector<16x128xf32>
    %37 = arith.addf %31, %36 : vector<16x128xf32>
    %c26 = arith.constant 26 : index
    %c0_31 = arith.constant 0 : index
    %38 = vector.load %arg1[%c26, %c0_31] : memref<48x8xf32, #tpu.memory_space<vmem>>, vector<16x8xf32>
    %39 = arith.truncf %38 : vector<16x8xf32> to vector<16x8xbf16>
    %c2_32 = arith.constant 2 : index
    %c0_33 = arith.constant 0 : index
    %c0_34 = arith.constant 0 : index
    %40 = vector.load %arg2[%c2_32, %c0_33, %c0_34] : memref<3x8x128xbf16, #tpu.memory_space<vmem>>, vector<1x8x128xbf16>
    %41 = vector.shape_cast %40 : vector<1x8x128xbf16> to vector<8x128xbf16>
    %cst_35 = arith.constant dense<0.000000e+00> : vector<16x128xf32>
    %42 = tpu.matmul %39, %41, %cst_35 {dimension_numbers = #tpu.dot_dimension_numbers<[1], [0], [0], [1], [0, 0, 1, 1], [], []>} : vector<16x8xbf16>, vector<8x128xbf16>, vector<16x128xf32> -> vector<16x128xf32>
    %43 = arith.addf %37, %42 : vector<16x128xf32>
    %c0_36 = arith.constant 0 : index
    %c0_37 = arith.constant 0 : index
    %44 = vector.load %arg6[%c0_36, %c0_37] : memref<4x128xf32, #tpu.memory_space<vmem>>, vector<1x128xf32>
    %45 = vector.broadcast %44 : vector<1x128xf32> to vector<16x128xf32>
    %46 = arith.addf %43, %45 : vector<16x128xf32>
    %cst_38 = arith.constant 0.000000e+00 : f32
    %47 = vector.broadcast %cst_38 : f32 to vector<16x128xf32>
    %48 = arith.maximumf %46, %47 : vector<16x128xf32>
    %c16 = arith.constant 16 : index
    %c0_39 = arith.constant 0 : index
    %49 = vector.load %arg8[%c16, %c0_39] : memref<32x128xf32, #tpu.memory_space<vmem>>, vector<16x128xf32>
    tpu.vector_store %arg8[%c16, %c0_39], %48 {strides = array<i32>} : memref<32x128xf32, #tpu.memory_space<vmem>>, vector<16x128xf32>,
    %c0_40 = arith.constant 0 : index
    %c0_41 = arith.constant 0 : index
    %50 = tpu.strided_load %arg8[%c0_40, %c0_41] {strides = array<i32: 2, 1>} : memref<32x128xf32, #tpu.memory_space<vmem>>, vector<8x128xf32>
    %c1_42 = arith.constant 1 : index
    %c0_43 = arith.constant 0 : index
    %51 = tpu.strided_load %arg8[%c1_42, %c0_43] {strides = array<i32: 2, 1>} : memref<32x128xf32, #tpu.memory_space<vmem>>, vector<8x128xf32>
    %52 = arith.maximumf %50, %51 : vector<8x128xf32>
    %cst_44 = arith.constant 0.000000e+00 : f32
    %53 = vector.broadcast %cst_44 : f32 to vector<1x8xf32>
    %c0_45 = arith.constant 0 : index
    %c0_46 = arith.constant 0 : index
    %54 = vector.load %arg9[%c0_45, %c0_46] : memref<32x8xf32, #tpu.memory_space<vmem>>, vector<1x8xf32>
    tpu.vector_store %arg9[%c0_45, %c0_46], %53 {strides = array<i32>} : memref<32x8xf32, #tpu.memory_space<vmem>>, vector<1x8xf32>,
    %cst_47 = arith.constant 0.000000e+00 : f32
    %55 = vector.broadcast %cst_47 : f32 to vector<1x8xf32>
    %c9 = arith.constant 9 : index
    %c0_48 = arith.constant 0 : index
    %56 = vector.load %arg9[%c9, %c0_48] : memref<32x8xf32, #tpu.memory_space<vmem>>, vector<1x8xf32>
    tpu.vector_store %arg9[%c9, %c0_48], %55 {strides = array<i32>} : memref<32x8xf32, #tpu.memory_space<vmem>>, vector<1x8xf32>,
    %57 = vector.extract_strided_slice %52 {offsets = [0, 0], sizes = [8, 8], strides = [1, 1]} : vector<8x128xf32> to vector<8x8xf32>
    %c1_49 = arith.constant 1 : index
    %c0_50 = arith.constant 0 : index
    %58 = vector.load %arg9[%c1_49, %c0_50] : memref<32x8xf32, #tpu.memory_space<vmem>>, vector<8x8xf32>
    tpu.vector_store %arg9[%c1_49, %c0_50], %57 {strides = array<i32>} : memref<32x8xf32, #tpu.memory_space<vmem>>, vector<8x8xf32>,
    %c16_51 = arith.constant 16 : index
    %c0_52 = arith.constant 0 : index
    %59 = tpu.strided_load %arg8[%c16_51, %c0_52] {strides = array<i32: 2, 1>} : memref<32x128xf32, #tpu.memory_space<vmem>>, vector<8x128xf32>
    %c17 = arith.constant 17 : index
    %c0_53 = arith.constant 0 : index
    %60 = tpu.strided_load %arg8[%c17, %c0_53] {strides = array<i32: 2, 1>} : memref<32x128xf32, #tpu.memory_space<vmem>>, vector<8x128xf32>
    %61 = arith.maximumf %59, %60 : vector<8x128xf32>
    %cst_54 = arith.constant 0.000000e+00 : f32
    %62 = vector.broadcast %cst_54 : f32 to vector<1x8xf32>
    %c16_55 = arith.constant 16 : index
    %c0_56 = arith.constant 0 : index
    %63 = vector.load %arg9[%c16_55, %c0_56] : memref<32x8xf32, #tpu.memory_space<vmem>>, vector<1x8xf32>
    tpu.vector_store %arg9[%c16_55, %c0_56], %62 {strides = array<i32>} : memref<32x8xf32, #tpu.memory_space<vmem>>, vector<1x8xf32>,
    %cst_57 = arith.constant 0.000000e+00 : f32
    %64 = vector.broadcast %cst_57 : f32 to vector<1x8xf32>
    %c25_58 = arith.constant 25 : index
    %c0_59 = arith.constant 0 : index
    %65 = vector.load %arg9[%c25_58, %c0_59] : memref<32x8xf32, #tpu.memory_space<vmem>>, vector<1x8xf32>
    tpu.vector_store %arg9[%c25_58, %c0_59], %64 {strides = array<i32>} : memref<32x8xf32, #tpu.memory_space<vmem>>, vector<1x8xf32>,
    %66 = vector.extract_strided_slice %61 {offsets = [0, 0], sizes = [8, 8], strides = [1, 1]} : vector<8x128xf32> to vector<8x8xf32>
    %c17_60 = arith.constant 17 : index
    %c0_61 = arith.constant 0 : index
    %67 = vector.load %arg9[%c17_60, %c0_61] : memref<32x8xf32, #tpu.memory_space<vmem>>, vector<8x8xf32>
    tpu.vector_store %arg9[%c17_60, %c0_61], %66 {strides = array<i32>} : memref<32x8xf32, #tpu.memory_space<vmem>>, vector<8x8xf32>,
    %cst_62 = arith.constant 0.000000e+00 : f32
    %68 = vector.broadcast %cst_62 : f32 to vector<8x128xf32>
    %c0_63 = arith.constant 0 : index
    %c0_64 = arith.constant 0 : index
    %69 = vector.load %arg9[%c0_63, %c0_64] : memref<32x8xf32, #tpu.memory_space<vmem>>, vector<8x8xf32>
    %70 = arith.truncf %69 : vector<8x8xf32> to vector<8x8xbf16>
    %c0_65 = arith.constant 0 : index
    %c0_66 = arith.constant 0 : index
    %c0_67 = arith.constant 0 : index
    %71 = vector.load %arg3[%c0_65, %c0_66, %c0_67] : memref<3x8x128xbf16, #tpu.memory_space<vmem>>, vector<1x8x128xbf16>
    %72 = vector.shape_cast %71 : vector<1x8x128xbf16> to vector<8x128xbf16>
    %cst_68 = arith.constant dense<0.000000e+00> : vector<8x128xf32>
    %73 = tpu.matmul %70, %72, %cst_68 {dimension_numbers = #tpu.dot_dimension_numbers<[1], [0], [0], [1], [0, 0, 1, 1], [], []>} : vector<8x8xbf16>, vector<8x128xbf16>, vector<8x128xf32> -> vector<8x128xf32>
    %74 = arith.addf %68, %73 : vector<8x128xf32>
    %c1_69 = arith.constant 1 : index
    %c0_70 = arith.constant 0 : index
    %75 = vector.load %arg9[%c1_69, %c0_70] : memref<32x8xf32, #tpu.memory_space<vmem>>, vector<8x8xf32>
    %76 = arith.truncf %75 : vector<8x8xf32> to vector<8x8xbf16>
    %c1_71 = arith.constant 1 : index
    %c0_72 = arith.constant 0 : index
    %c0_73 = arith.constant 0 : index
    %77 = vector.load %arg3[%c1_71, %c0_72, %c0_73] : memref<3x8x128xbf16, #tpu.memory_space<vmem>>, vector<1x8x128xbf16>
    %78 = vector.shape_cast %77 : vector<1x8x128xbf16> to vector<8x128xbf16>
    %cst_74 = arith.constant dense<0.000000e+00> : vector<8x128xf32>
    %79 = tpu.matmul %76, %78, %cst_74 {dimension_numbers = #tpu.dot_dimension_numbers<[1], [0], [0], [1], [0, 0, 1, 1], [], []>} : vector<8x8xbf16>, vector<8x128xbf16>, vector<8x128xf32> -> vector<8x128xf32>
    %80 = arith.addf %74, %79 : vector<8x128xf32>
    %c2_75 = arith.constant 2 : index
    %c0_76 = arith.constant 0 : index
    %81 = vector.load %arg9[%c2_75, %c0_76] : memref<32x8xf32, #tpu.memory_space<vmem>>, vector<8x8xf32>
    %82 = arith.truncf %81 : vector<8x8xf32> to vector<8x8xbf16>
    %c2_77 = arith.constant 2 : index
    %c0_78 = arith.constant 0 : index
    %c0_79 = arith.constant 0 : index
    %83 = vector.load %arg3[%c2_77, %c0_78, %c0_79] : memref<3x8x128xbf16, #tpu.memory_space<vmem>>, vector<1x8x128xbf16>
    %84 = vector.shape_cast %83 : vector<1x8x128xbf16> to vector<8x128xbf16>
    %cst_80 = arith.constant dense<0.000000e+00> : vector<8x128xf32>
    %85 = tpu.matmul %82, %84, %cst_80 {dimension_numbers = #tpu.dot_dimension_numbers<[1], [0], [0], [1], [0, 0, 1, 1], [], []>} : vector<8x8xbf16>, vector<8x128xbf16>, vector<8x128xf32> -> vector<8x128xf32>
    %86 = arith.addf %80, %85 : vector<8x128xf32>
    %c1_81 = arith.constant 1 : index
    %c0_82 = arith.constant 0 : index
    %87 = vector.load %arg6[%c1_81, %c0_82] : memref<4x128xf32, #tpu.memory_space<vmem>>, vector<1x128xf32>
    %88 = vector.broadcast %87 : vector<1x128xf32> to vector<8x128xf32>
    %89 = arith.addf %86, %88 : vector<8x128xf32>
    %cst_83 = arith.constant 0.000000e+00 : f32
    %90 = vector.broadcast %cst_83 : f32 to vector<8x128xf32>
    %91 = arith.maximumf %89, %90 : vector<8x128xf32>
    %c0_84 = arith.constant 0 : index
    %c0_85 = arith.constant 0 : index
    %92 = vector.load %arg10[%c0_84, %c0_85] : memref<16x128xf32, #tpu.memory_space<vmem>>, vector<8x128xf32>
    tpu.vector_store %arg10[%c0_84, %c0_85], %91 {strides = array<i32>} : memref<16x128xf32, #tpu.memory_space<vmem>>, vector<8x128xf32>,
    %cst_86 = arith.constant 0.000000e+00 : f32
    %93 = vector.broadcast %cst_86 : f32 to vector<8x128xf32>
    %c16_87 = arith.constant 16 : index
    %c0_88 = arith.constant 0 : index
    %94 = vector.load %arg9[%c16_87, %c0_88] : memref<32x8xf32, #tpu.memory_space<vmem>>, vector<8x8xf32>
    %95 = arith.truncf %94 : vector<8x8xf32> to vector<8x8xbf16>
    %c0_89 = arith.constant 0 : index
    %c0_90 = arith.constant 0 : index
    %c0_91 = arith.constant 0 : index
    %96 = vector.load %arg3[%c0_89, %c0_90, %c0_91] : memref<3x8x128xbf16, #tpu.memory_space<vmem>>, vector<1x8x128xbf16>
    %97 = vector.shape_cast %96 : vector<1x8x128xbf16> to vector<8x128xbf16>
    %cst_92 = arith.constant dense<0.000000e+00> : vector<8x128xf32>
    %98 = tpu.matmul %95, %97, %cst_92 {dimension_numbers = #tpu.dot_dimension_numbers<[1], [0], [0], [1], [0, 0, 1, 1], [], []>} : vector<8x8xbf16>, vector<8x128xbf16>, vector<8x128xf32> -> vector<8x128xf32>
    %99 = arith.addf %93, %98 : vector<8x128xf32>
    %c17_93 = arith.constant 17 : index
    %c0_94 = arith.constant 0 : index
    %100 = vector.load %arg9[%c17_93, %c0_94] : memref<32x8xf32, #tpu.memory_space<vmem>>, vector<8x8xf32>
    %101 = arith.truncf %100 : vector<8x8xf32> to vector<8x8xbf16>
    %c1_95 = arith.constant 1 : index
    %c0_96 = arith.constant 0 : index
    %c0_97 = arith.constant 0 : index
    %102 = vector.load %arg3[%c1_95, %c0_96, %c0_97] : memref<3x8x128xbf16, #tpu.memory_space<vmem>>, vector<1x8x128xbf16>
    %103 = vector.shape_cast %102 : vector<1x8x128xbf16> to vector<8x128xbf16>
    %cst_98 = arith.constant dense<0.000000e+00> : vector<8x128xf32>
    %104 = tpu.matmul %101, %103, %cst_98 {dimension_numbers = #tpu.dot_dimension_numbers<[1], [0], [0], [1], [0, 0, 1, 1], [], []>} : vector<8x8xbf16>, vector<8x128xbf16>, vector<8x128xf32> -> vector<8x128xf32>
    %105 = arith.addf %99, %104 : vector<8x128xf32>
    %c18 = arith.constant 18 : index
    %c0_99 = arith.constant 0 : index
    %106 = vector.load %arg9[%c18, %c0_99] : memref<32x8xf32, #tpu.memory_space<vmem>>, vector<8x8xf32>
    %107 = arith.truncf %106 : vector<8x8xf32> to vector<8x8xbf16>
    %c2_100 = arith.constant 2 : index
    %c0_101 = arith.constant 0 : index
    %c0_102 = arith.constant 0 : index
    %108 = vector.load %arg3[%c2_100, %c0_101, %c0_102] : memref<3x8x128xbf16, #tpu.memory_space<vmem>>, vector<1x8x128xbf16>
    %109 = vector.shape_cast %108 : vector<1x8x128xbf16> to vector<8x128xbf16>
    %cst_103 = arith.constant dense<0.000000e+00> : vector<8x128xf32>
    %110 = tpu.matmul %107, %109, %cst_103 {dimension_numbers = #tpu.dot_dimension_numbers<[1], [0], [0], [1], [0, 0, 1, 1], [], []>} : vector<8x8xbf16>, vector<8x128xbf16>, vector<8x128xf32> -> vector<8x128xf32>
    %111 = arith.addf %105, %110 : vector<8x128xf32>
    %c1_104 = arith.constant 1 : index
    %c0_105 = arith.constant 0 : index
    %112 = vector.load %arg6[%c1_104, %c0_105] : memref<4x128xf32, #tpu.memory_space<vmem>>, vector<1x128xf32>
    %113 = vector.broadcast %112 : vector<1x128xf32> to vector<8x128xf32>
    %114 = arith.addf %111, %113 : vector<8x128xf32>
    %cst_106 = arith.constant 0.000000e+00 : f32
    %115 = vector.broadcast %cst_106 : f32 to vector<8x128xf32>
    %116 = arith.maximumf %114, %115 : vector<8x128xf32>
    %c8 = arith.constant 8 : index
    %c0_107 = arith.constant 0 : index
    %117 = vector.load %arg10[%c8, %c0_107] : memref<16x128xf32, #tpu.memory_space<vmem>>, vector<8x128xf32>
    tpu.vector_store %arg10[%c8, %c0_107], %116 {strides = array<i32>} : memref<16x128xf32, #tpu.memory_space<vmem>>, vector<8x128xf32>,
    %c0_108 = arith.constant 0 : index
    %c0_109 = arith.constant 0 : index
    %118 = tpu.strided_load %arg10[%c0_108, %c0_109] {strides = array<i32: 2, 1>} : memref<16x128xf32, #tpu.memory_space<vmem>>, vector<4x128xf32>
    %c1_110 = arith.constant 1 : index
    %c0_111 = arith.constant 0 : index
    %119 = tpu.strided_load %arg10[%c1_110, %c0_111] {strides = array<i32: 2, 1>} : memref<16x128xf32, #tpu.memory_space<vmem>>, vector<4x128xf32>
    %120 = arith.maximumf %118, %119 : vector<4x128xf32>
    %121 = vector.extract_strided_slice %120 {offsets = [0, 0], sizes = [4, 8], strides = [1, 1]} : vector<4x128xf32> to vector<4x8xf32>
    %c0_112 = arith.constant 0 : index
    %c0_113 = arith.constant 0 : index
    %122 = vector.load %arg11[%c0_112, %c0_113] : memref<8x8xf32, #tpu.memory_space<vmem>>, vector<4x8xf32>
    tpu.vector_store %arg11[%c0_112, %c0_113], %121 {strides = array<i32>} : memref<8x8xf32, #tpu.memory_space<vmem>>, vector<4x8xf32>,
    %c8_114 = arith.constant 8 : index
    %c0_115 = arith.constant 0 : index
    %123 = tpu.strided_load %arg10[%c8_114, %c0_115] {strides = array<i32: 2, 1>} : memref<16x128xf32, #tpu.memory_space<vmem>>, vector<4x128xf32>
    %c9_116 = arith.constant 9 : index
    %c0_117 = arith.constant 0 : index
    %124 = tpu.strided_load %arg10[%c9_116, %c0_117] {strides = array<i32: 2, 1>} : memref<16x128xf32, #tpu.memory_space<vmem>>, vector<4x128xf32>
    %125 = arith.maximumf %123, %124 : vector<4x128xf32>
    %126 = vector.extract_strided_slice %125 {offsets = [0, 0], sizes = [4, 8], strides = [1, 1]} : vector<4x128xf32> to vector<4x8xf32>
    %c4 = arith.constant 4 : index
    %c0_118 = arith.constant 0 : index
    %127 = vector.load %arg11[%c4, %c0_118] : memref<8x8xf32, #tpu.memory_space<vmem>>, vector<4x8xf32>
    tpu.vector_store %arg11[%c4, %c0_118], %126 {strides = array<i32>} : memref<8x8xf32, #tpu.memory_space<vmem>>, vector<4x8xf32>,
    %cst_119 = arith.constant 0.000000e+00 : f32
    %128 = vector.broadcast %cst_119 : f32 to vector<2x128xf32>
    %c0_120 = arith.constant 0 : index
    %c0_121 = arith.constant 0 : index
    %129 = tpu.strided_load %arg11[%c0_120, %c0_121] {strides = array<i32: 4, 1>} : memref<8x8xf32, #tpu.memory_space<vmem>>, vector<2x8xf32>
    %130 = arith.truncf %129 : vector<2x8xf32> to vector<2x8xbf16>
    %c0_122 = arith.constant 0 : index
    %c0_123 = arith.constant 0 : index
    %c0_124 = arith.constant 0 : index
    %131 = vector.load %arg4[%c0_122, %c0_123, %c0_124] : memref<4x8x128xbf16, #tpu.memory_space<vmem>>, vector<1x8x128xbf16>
    %132 = vector.shape_cast %131 : vector<1x8x128xbf16> to vector<8x128xbf16>
    %cst_125 = arith.constant dense<0.000000e+00> : vector<2x128xf32>
    %133 = tpu.matmul %130, %132, %cst_125 {dimension_numbers = #tpu.dot_dimension_numbers<[1], [0], [0], [1], [0, 0, 1, 1], [], []>} : vector<2x8xbf16>, vector<8x128xbf16>, vector<2x128xf32> -> vector<2x128xf32>
    %134 = arith.addf %128, %133 : vector<2x128xf32>
    %c1_126 = arith.constant 1 : index
    %c0_127 = arith.constant 0 : index
    %135 = tpu.strided_load %arg11[%c1_126, %c0_127] {strides = array<i32: 4, 1>} : memref<8x8xf32, #tpu.memory_space<vmem>>, vector<2x8xf32>
    %136 = arith.truncf %135 : vector<2x8xf32> to vector<2x8xbf16>
    %c1_128 = arith.constant 1 : index
    %c0_129 = arith.constant 0 : index
    %c0_130 = arith.constant 0 : index
    %137 = vector.load %arg4[%c1_128, %c0_129, %c0_130] : memref<4x8x128xbf16, #tpu.memory_space<vmem>>, vector<1x8x128xbf16>
    %138 = vector.shape_cast %137 : vector<1x8x128xbf16> to vector<8x128xbf16>
    %cst_131 = arith.constant dense<0.000000e+00> : vector<2x128xf32>
    %139 = tpu.matmul %136, %138, %cst_131 {dimension_numbers = #tpu.dot_dimension_numbers<[1], [0], [0], [1], [0, 0, 1, 1], [], []>} : vector<2x8xbf16>, vector<8x128xbf16>, vector<2x128xf32> -> vector<2x128xf32>
    %140 = arith.addf %134, %139 : vector<2x128xf32>
    %c2_132 = arith.constant 2 : index
    %c0_133 = arith.constant 0 : index
    %141 = tpu.strided_load %arg11[%c2_132, %c0_133] {strides = array<i32: 4, 1>} : memref<8x8xf32, #tpu.memory_space<vmem>>, vector<2x8xf32>
    %142 = arith.truncf %141 : vector<2x8xf32> to vector<2x8xbf16>
    %c2_134 = arith.constant 2 : index
    %c0_135 = arith.constant 0 : index
    %c0_136 = arith.constant 0 : index
    %143 = vector.load %arg4[%c2_134, %c0_135, %c0_136] : memref<4x8x128xbf16, #tpu.memory_space<vmem>>, vector<1x8x128xbf16>
    %144 = vector.shape_cast %143 : vector<1x8x128xbf16> to vector<8x128xbf16>
    %cst_137 = arith.constant dense<0.000000e+00> : vector<2x128xf32>
    %145 = tpu.matmul %142, %144, %cst_137 {dimension_numbers = #tpu.dot_dimension_numbers<[1], [0], [0], [1], [0, 0, 1, 1], [], []>} : vector<2x8xbf16>, vector<8x128xbf16>, vector<2x128xf32> -> vector<2x128xf32>
    %146 = arith.addf %140, %145 : vector<2x128xf32>
    %c3 = arith.constant 3 : index
    %c0_138 = arith.constant 0 : index
    %147 = tpu.strided_load %arg11[%c3, %c0_138] {strides = array<i32: 4, 1>} : memref<8x8xf32, #tpu.memory_space<vmem>>, vector<2x8xf32>
    %148 = arith.truncf %147 : vector<2x8xf32> to vector<2x8xbf16>
    %c3_139 = arith.constant 3 : index
    %c0_140 = arith.constant 0 : index
    %c0_141 = arith.constant 0 : index
    %149 = vector.load %arg4[%c3_139, %c0_140, %c0_141] : memref<4x8x128xbf16, #tpu.memory_space<vmem>>, vector<1x8x128xbf16>
    %150 = vector.shape_cast %149 : vector<1x8x128xbf16> to vector<8x128xbf16>
    %cst_142 = arith.constant dense<0.000000e+00> : vector<2x128xf32>
    %151 = tpu.matmul %148, %150, %cst_142 {dimension_numbers = #tpu.dot_dimension_numbers<[1], [0], [0], [1], [0, 0, 1, 1], [], []>} : vector<2x8xbf16>, vector<8x128xbf16>, vector<2x128xf32> -> vector<2x128xf32>
    %152 = arith.addf %146, %151 : vector<2x128xf32>
    %c2_143 = arith.constant 2 : index
    %c0_144 = arith.constant 0 : index
    %153 = vector.load %arg6[%c2_143, %c0_144] : memref<4x128xf32, #tpu.memory_space<vmem>>, vector<1x128xf32>
    %154 = vector.broadcast %153 : vector<1x128xf32> to vector<2x128xf32>
    %155 = arith.addf %152, %154 : vector<2x128xf32>
    %cst_145 = arith.constant 0.000000e+00 : f32
    %156 = vector.broadcast %cst_145 : f32 to vector<2x128xf32>
    %157 = arith.maximumf %155, %156 : vector<2x128xf32>
    %158 = vector.extract_strided_slice %157 {offsets = [0, 0], sizes = [2, 32], strides = [1, 1]} : vector<2x128xf32> to vector<2x32xf32>
    %159 = arith.truncf %158 : vector<2x32xf32> to vector<2x32xbf16>
    %c0_146 = arith.constant 0 : index
    %c0_147 = arith.constant 0 : index
    %160 = vector.load %arg5[%c0_146, %c0_147] : memref<32x128xbf16, #tpu.memory_space<vmem>>, vector<32x128xbf16>
    %cst_148 = arith.constant dense<0.000000e+00> : vector<2x128xf32>
    %161 = tpu.matmul %159, %160, %cst_148 {dimension_numbers = #tpu.dot_dimension_numbers<[1], [0], [0], [1], [0, 0, 1, 1], [], []>} : vector<2x32xbf16>, vector<32x128xbf16>, vector<2x128xf32> -> vector<2x128xf32>
    %c3_149 = arith.constant 3 : index
    %c0_150 = arith.constant 0 : index
    %162 = vector.load %arg6[%c3_149, %c0_150] : memref<4x128xf32, #tpu.memory_space<vmem>>, vector<1x128xf32>
    %163 = vector.broadcast %162 : vector<1x128xf32> to vector<2x128xf32>
    %164 = arith.addf %161, %163 : vector<2x128xf32>
    %165 = math.tanh %164 : vector<2x128xf32>
    %c0_151 = arith.constant 0 : index
    %c0_152 = arith.constant 0 : index
    %166 = vector.load %arg7[%c0_151, %c0_152] : memref<2x128xf32, #tpu.memory_space<vmem>>, vector<2x128xf32>
    tpu.vector_store %arg7[%c0_151, %c0_152], %165 {strides = array<i32>} : memref<2x128xf32, #tpu.memory_space<vmem>>, vector<2x128xf32>,
    return
  }
  func.func @transform_0(%arg0: i32) -> (i32, i32) {
    %c0_i32 = arith.constant 0 : i32
    %c0_i32_0 = arith.constant 0 : i32
    %c0_i32_1 = arith.constant 0 : i32
    return %c0_i32, %c0_i32_0 : i32, i32
  }
  func.func @transform_1(%arg0: i32) -> (i32, i32, i32) {
    %c0_i32 = arith.constant 0 : i32
    %c0_i32_0 = arith.constant 0 : i32
    %c0_i32_1 = arith.constant 0 : i32
    %c0_i32_2 = arith.constant 0 : i32
    return %c0_i32, %c0_i32_0, %c0_i32_1 : i32, i32, i32
  }
  func.func @transform_2(%arg0: i32) -> (i32, i32, i32) {
    %c0_i32 = arith.constant 0 : i32
    %c0_i32_0 = arith.constant 0 : i32
    %c0_i32_1 = arith.constant 0 : i32
    %c0_i32_2 = arith.constant 0 : i32
    return %c0_i32, %c0_i32_0, %c0_i32_1 : i32, i32, i32
  }
  func.func @transform_3(%arg0: i32) -> (i32, i32, i32) {
    %c0_i32 = arith.constant 0 : i32
    %c0_i32_0 = arith.constant 0 : i32
    %c0_i32_1 = arith.constant 0 : i32
    %c0_i32_2 = arith.constant 0 : i32
    return %c0_i32, %c0_i32_0, %c0_i32_1 : i32, i32, i32
  }
  func.func @transform_4(%arg0: i32) -> (i32, i32) {
    %c0_i32 = arith.constant 0 : i32
    %c0_i32_0 = arith.constant 0 : i32
    %c0_i32_1 = arith.constant 0 : i32
    return %c0_i32, %c0_i32_0 : i32, i32
  }
  func.func @transform_5(%arg0: i32) -> (i32, i32) {
    %c0_i32 = arith.constant 0 : i32
    %c0_i32_0 = arith.constant 0 : i32
    %c0_i32_1 = arith.constant 0 : i32
    return %c0_i32, %c0_i32_0 : i32, i32
  }
  func.func @transform_6(%arg0: i32) -> (i32, i32) {
    %c0_i32 = arith.constant 0 : i32
    %c0_i32_0 = arith.constant 0 : i32
    %c0_i32_1 = arith.constant 0 : i32
    return %c0_i32, %c0_i32_0 : i32, i32
  }
}

</mosaic_0001>

<llo_original>
// kernel: conv1d_forward.1
$region0: #{conv1d_forward.1}
  #allocation0 [shape = 'u32[]', space=smem, size = 0x4, offset = 0x4, fixed_abs, tag = 'smem constant byte address 0x4 - core index']
  #allocation1 [shape = 'u32[144,128]{1,0:T(1,128)}', space=vmem, size = 0x12000, scoped, tag = 'internal scratch']
  #allocation2 [shape = 'f32[32,128]{1,0:T(8,128)}', space=vmem, size = 0x4000, scoped, tag = 'scratch operand']
  #allocation3 [shape = 'f32[32,8]{1,0:T(8,128)}', space=vmem, size = 0x4000, scoped, tag = 'scratch operand']
  #allocation4 [shape = 'f32[16,128]{1,0:T(8,128)}', space=vmem, size = 0x2000, scoped, tag = 'scratch operand']
  #allocation5 [shape = 'f32[8,8]{1,0:T(8,128)}', space=vmem, size = 0x1000, scoped, tag = 'scratch operand']
  %s0 = inlined_call_operand.vmem [shape: f32[48,8], index: 0, kind: input, shape index: {}]
  %s1 = inlined_call_operand.vmem [shape: bf16[3,8,128], index: 1, kind: input, shape index: {}]
  %s2 = inlined_call_operand.vmem [shape: bf16[3,8,128], index: 2, kind: input, shape index: {}]
  %s3 = inlined_call_operand.vmem [shape: bf16[4,8,128], index: 3, kind: input, shape index: {}]
  %s4 = inlined_call_operand.vmem [shape: bf16[32,128], index: 4, kind: input, shape index: {}]
  %s5 = inlined_call_operand.vmem [shape: f32[4,128], index: 5, kind: input, shape index: {}]
  %s6 = inlined_call_operand.hbm [shape: f32[2,128], index: 6, kind: output, shape index: {}]
  %s7 = sld [smem:[#allocation0]]
  $region34: #{conv1d_forward.1} parent=0
    _
  %s9 = ssub.s32 1, %s7
  %s10 = scalar_select 0, %s9, %s7
  $region1: #{conv1d_forward.1} parent=0
    #allocation6 [shape = 'u8[1024]{0}', space=vmem, size = 0x400, scoped, tag = 'output window, operand 0, single buffered']
    #allocation7 [shape = 's32[1]{0}', space=sflag, size = 0x4, scoped, tag = 'scoped memory for conv1d_forward.1']
    %11 = vsyncpa [#allocation7], 0
    // Predicated region
    $region2: #{conv1d_forward.1} parent=1 // pred_check
      _
    $region3: #{conv1d_forward.1} parent=1 // pred_check_branch
      %13 = sbr.rel (0) target = $region5
    $region4: #{conv1d_forward.1} parent=1 // pred_region
      _
    $region5: #{conv1d_forward.1} parent=1 // pred_fallthru
      _
    // Predicated region
    $region6: #{conv1d_forward.1} parent=1 // pred_check
      _
    $region7: #{conv1d_forward.1} parent=1 // pred_check_branch
      %15 = sbr.rel (0) target = $region9
    $region8: #{conv1d_forward.1} parent=1 // pred_region
      _
    $region9: #{conv1d_forward.1} parent=1 // pred_fallthru
      _
    // Predicated region
    $region10: #{conv1d_forward.1} parent=1 // pred_check
      _
    $region11: #{conv1d_forward.1} parent=1 // pred_check_branch
      %17 = sbr.rel (0) target = $region13
    $region12: #{conv1d_forward.1} parent=1 // pred_region
      _
    $region13: #{conv1d_forward.1} parent=1 // pred_fallthru
      _
    // Predicated region
    $region14: #{conv1d_forward.1} parent=1 // pred_check
      _
    $region15: #{conv1d_forward.1} parent=1 // pred_check_branch
      %19 = sbr.rel (0) target = $region17
    $region16: #{conv1d_forward.1} parent=1 // pred_region
      _
    $region17: #{conv1d_forward.1} parent=1 // pred_fallthru
      _
    // Predicated region
    $region18: #{conv1d_forward.1} parent=1 // pred_check
      _
    $region19: #{conv1d_forward.1} parent=1 // pred_check_branch
      %21 = sbr.rel (0) target = $region21
    $region20: #{conv1d_forward.1} parent=1 // pred_region
      _
    $region21: #{conv1d_forward.1} parent=1 // pred_fallthru
      _
    // Predicated region
    $region22: #{conv1d_forward.1} parent=1 // pred_check
      _
    $region23: #{conv1d_forward.1} parent=1 // pred_check_branch
      %23 = sbr.rel (0) target = $region25
    $region24: #{conv1d_forward.1} parent=1 // pred_region
      _
    $region25: #{conv1d_forward.1} parent=1 // pred_fallthru
      _
    %v25 = vld [vmem:[%s0] sm:$0xff]
    %v26 = vld [vmem:[%s0 + $0x8] sm:$0xff]
    %v27 = vpack.c.bf16 %v26, %v25
    %v28 = vld [vmem:[%s1] sm:$0xf]
    %v29 = vld [vmem:[%s0 + $0x1] sm:$0xff]
    %v30 = vld [vmem:[%s0 + $0x9] sm:$0xff]
    %v31 = vpack.c.bf16 %v30, %v29
    %s32 = scalar_lea.vmem %s1, 4
    %v33 = vld [vmem:[%s32] sm:$0xf]
    %vm34 = vcmask 64512
    %v36 = vsel %vm34, %v31, 0
    %vm38 = vcmask 1043456
    %v40 = vsel %vm38, %v33, 0
    %42 = vmatprep.subr.bf16.mxu0 0
    %43 = vmatpush1.bf16.msra.mxu0 %v40
    %44 = vmatprep.subr.bf16.mxu0 0
    %45 = vmatpush1.bf16.msra.mxu0 0
    %46 = vmatprep.subr.bf16.mxu0 0
    %47 = vmatpush1.bf16.msra.mxu0 0
    %48 = vmatprep.subr.bf16.mxu0 0
    %49 = vmatpush1.bf16.msra.mxu0 0
    %50 = vmatprep.subr.bf16.mxu0 0
    %51 = vmatpush1.bf16.msra.mxu0 0
    %52 = vmatprep.subr.bf16.mxu0 0
    %53 = vmatpush1.bf16.msra.mxu0 0
    %54 = vmatprep.subr.bf16.mxu0 0
    %55 = vmatpush1.bf16.msra.mxu0 0
    %56 = vmatprep.subr.bf16.mxu0 0
    %57 = vmatpush1.bf16.msra.mxu0 0
    %58 = vmatprep.subr.bf16.mxu0 0
    %59 = vmatpush1.bf16.msra.mxu0 0
    %60 = vmatprep.subr.bf16.mxu0 0
    %61 = vmatpush1.bf16.msra.mxu0 0
    %62 = vmatprep.subr.bf16.mxu0 0
    %63 = vmatpush1.bf16.msra.mxu0 0
    %64 = vmatprep.subr.bf16.mxu0 0
    %65 = vmatpush1.bf16.msra.mxu0 0
    %66 = vmatprep.subr.bf16.mxu0 0
    %67 = vmatpush1.bf16.msra.mxu0 0
    %68 = vmatprep.subr.bf16.mxu0 0
    %69 = vmatpush1.bf16.msra.mxu0 0
    %70 = vmatprep.subr.bf16.mxu0 0
    %71 = vmatpush1.bf16.msra.mxu0 0
    %72 = vmatprep.subr.bf16.mxu0 0
    %73 = vmatpush1.bf16.msra.mxu0 0
    %74 = vmatprep.mubr.bf16.mxu0 0
    %75 = vmatmul.mubr.bf16.gmra.mrb[0].mxu0 %v36
    %v76 = vpop.f32.mrb[0].mxu0
    %v77 = vadd.f32 0.0, %v76
    %v78 = vpop.f32.mrb[0].mxu0
    %v79 = vpop.f32.mrb[0].mxu0
    %v80 = vadd.f32 0.0, %v79
    %v81 = vpop.f32.mrb[0].mxu0
    %82 = vdwg.mxu0
    %v84 = vsel %vm34, %v27, 0
    %v87 = vsel %vm38, %v28, 0
    %89 = vmatprep.subr.bf16.mxu0 0
    %90 = vmatpush1.bf16.msra.mxu0 %v87
    %91 = vmatprep.subr.bf16.mxu0 0
    %92 = vmatpush1.bf16.msra.mxu0 0
    %93 = vmatprep.subr.bf16.mxu0 0
    %94 = vmatpush1.bf16.msra.mxu0 0
    %95 = vmatprep.subr.bf16.mxu0 0
    %96 = vmatpush1.bf16.msra.mxu0 0
    %97 = vmatprep.subr.bf16.mxu0 0
    %98 = vmatpush1.bf16.msra.mxu0 0
    %99 = vmatprep.subr.bf16.mxu0 0
    %100 = vmatpush1.bf16.msra.mxu0 0
    %101 = vmatprep.subr.bf16.mxu0 0
    %102 = vmatpush1.bf16.msra.mxu0 0
    %103 = vmatprep.subr.bf16.mxu0 0
    %104 = vmatpush1.bf16.msra.mxu0 0
    %105 = vmatprep.subr.bf16.mxu0 0
    %106 = vmatpush1.bf16.msra.mxu0 0
    %107 = vmatprep.subr.bf16.mxu0 0
    %108 = vmatpush1.bf16.msra.mxu0 0
    %109 = vmatprep.subr.bf16.mxu0 0
    %110 = vmatpush1.bf16.msra.mxu0 0
    %111 = vmatprep.subr.bf16.mxu0 0
    %112 = vmatpush1.bf16.msra.mxu0 0
    %113 = vmatprep.subr.bf16.mxu0 0
    %114 = vmatpush1.bf16.msra.mxu0 0
    %115 = vmatprep.subr.bf16.mxu0 0
    %116 = vmatpush1.bf16.msra.mxu0 0
    %117 = vmatprep.subr.bf16.mxu0 0
    %118 = vmatpush1.bf16.msra.mxu0 0
    %119 = vmatprep.subr.bf16.mxu0 0
    %120 = vmatpush1.bf16.msra.mxu0 0
    %121 = vmatprep.mubr.bf16.mxu0 0
    %122 = vmatmul.mubr.bf16.gmra.mrb[0].mxu0 %v84
    %v123 = vpop.f32.mrb[0].mxu0
    %v124 = vadd.f32 %v77, %v123
    %v125 = vpop.f32.mrb[0].mxu0
    %v126 = vpop.f32.mrb[0].mxu0
    %v127 = vadd.f32 %v80, %v126
    %v128 = vpop.f32.mrb[0].mxu0
    %129 = vdwg.mxu0
    %v130 = vld [vmem:[%s0 + $0x2] sm:$0xff]
    %v131 = vld [vmem:[%s0 + $0xa] sm:$0xff]
    %v132 = vpack.c.bf16 %v131, %v130
    %s133 = scalar_lea.vmem %s1, 8
    %v134 = vld [vmem:[%s133] sm:$0xf]
    %v136 = vsel %vm34, %v132, 0
    %v139 = vsel %vm38, %v134, 0
    %141 = vmatprep.subr.bf16.mxu0 0
    %142 = vmatpush1.bf16.msra.mxu0 %v139
    %143 = vmatprep.subr.bf16.mxu0 0
    %144 = vmatpush1.bf16.msra.mxu0 0
    %145 = vmatprep.subr.bf16.mxu0 0
    %146 = vmatpush1.bf16.msra.mxu0 0
    %147 = vmatprep.subr.bf16.mxu0 0
    %148 = vmatpush1.bf16.msra.mxu0 0
    %149 = vmatprep.subr.bf16.mxu0 0
    %150 = vmatpush1.bf16.msra.mxu0 0
    %151 = vmatprep.subr.bf16.mxu0 0
    %152 = vmatpush1.bf16.msra.mxu0 0
    %153 = vmatprep.subr.bf16.mxu0 0
    %154 = vmatpush1.bf16.msra.mxu0 0
    %155 = vmatprep.subr.bf16.mxu0 0
    %156 = vmatpush1.bf16.msra.mxu0 0
    %157 = vmatprep.subr.bf16.mxu0 0
    %158 = vmatpush1.bf16.msra.mxu0 0
    %159 = vmatprep.subr.bf16.mxu0 0
    %160 = vmatpush1.bf16.msra.mxu0 0
    %161 = vmatprep.subr.bf16.mxu0 0
    %162 = vmatpush1.bf16.msra.mxu0 0
    %163 = vmatprep.subr.bf16.mxu0 0
    %164 = vmatpush1.bf16.msra.mxu0 0
    %165 = vmatprep.subr.bf16.mxu0 0
    %166 = vmatpush1.bf16.msra.mxu0 0
    %167 = vmatprep.subr.bf16.mxu0 0
    %168 = vmatpush1.bf16.msra.mxu0 0
    %169 = vmatprep.subr.bf16.mxu0 0
    %170 = vmatpush1.bf16.msra.mxu0 0
    %171 = vmatprep.subr.bf16.mxu0 0
    %172 = vmatpush1.bf16.msra.mxu0 0
    %173 = vmatprep.mubr.bf16.mxu0 0
    %174 = vmatmul.mubr.bf16.gmra.mrb[0].mxu0 %v136
    %v175 = vpop.f32.mrb[0].mxu0
    %v176 = vadd.f32 0.0, %v175
    %v177 = vpop.f32.mrb[0].mxu0
    %v178 = vpop.f32.mrb[0].mxu0
    %v179 = vadd.f32 0.0, %v178
    %v180 = vpop.f32.mrb[0].mxu0
    %181 = vdwg.mxu0
    %v182 = vadd.f32 %v124, %v176
    %v183 = vadd.f32 %v127, %v179
    %v184 = vld [vmem:[%s5] sm:$0x1]
    %v185 = vlaneseq
    %v186 = vshrl.u32 %v185, 7
    %v187 = vsub.s32 0, %v186
    %v188 = vrot.slane %v184, %v187
    %v189 = vadd.f32 %v182, %v188
    %v190 = vadd.f32 %v183, %v188
    %v191 = vmax.f32 %v189, 0.0
    %v192 = vmax.f32 %v190, 0.0
    %193 = vst [vmem:[#allocation2] sm:$0xff] %v191
    %194 = vst [vmem:[#allocation2 + $0x8] sm:$0xff] %v192
    %v195 = vld [vmem:[%s0 + $0x18] sm:$0xff]
    %v196 = vld [vmem:[%s0 + $0x20] sm:$0xff]
    %v197 = vpack.c.bf16 %v196, %v195
    %v198 = vld [vmem:[%s1] sm:$0xf]
    %v199 = vld [vmem:[%s0 + $0x19] sm:$0xff]
    %v200 = vld [vmem:[%s0 + $0x21] sm:$0xff]
    %v201 = vpack.c.bf16 %v200, %v199
    %v202 = vld [vmem:[%s32] sm:$0xf]
    %v204 = vsel %vm34, %v201, 0
    %v207 = vsel %vm38, %v202, 0
    %209 = vmatprep.subr.bf16.mxu0 0
    %210 = vmatpush1.bf16.msra.mxu0 %v207
    %211 = vmatprep.subr.bf16.mxu0 0
    %212 = vmatpush1.bf16.msra.mxu0 0
    %213 = vmatprep.subr.bf16.mxu0 0
    %214 = vmatpush1.bf16.msra.mxu0 0
    %215 = vmatprep.subr.bf16.mxu0 0
    %216 = vmatpush1.bf16.msra.mxu0 0
    %217 = vmatprep.subr.bf16.mxu0 0
    %218 = vmatpush1.bf16.msra.mxu0 0
    %219 = vmatprep.subr.bf16.mxu0 0
    %220 = vmatpush1.bf16.msra.mxu0 0
    %221 = vmatprep.subr.bf16.mxu0 0
    %222 = vmatpush1.bf16.msra.mxu0 0
    %223 = vmatprep.subr.bf16.mxu0 0
    %224 = vmatpush1.bf16.msra.mxu0 0
    %225 = vmatprep.subr.bf16.mxu0 0
    %226 = vmatpush1.bf16.msra.mxu0 0
    %227 = vmatprep.subr.bf16.mxu0 0
    %228 = vmatpush1.bf16.msra.mxu0 0
    %229 = vmatprep.subr.bf16.mxu0 0
    %230 = vmatpush1.bf16.msra.mxu0 0
    %231 = vmatprep.subr.bf16.mxu0 0
    %232 = vmatpush1.bf16.msra.mxu0 0
    %233 = vmatprep.subr.bf16.mxu0 0
    %234 = vmatpush1.bf16.msra.mxu0 0
    %235 = vmatprep.subr.bf16.mxu0 0
    %236 = vmatpush1.bf16.msra.mxu0 0
    %237 = vmatprep.subr.bf16.mxu0 0
    %238 = vmatpush1.bf16.msra.mxu0 0
    %239 = vmatprep.subr.bf16.mxu0 0
    %240 = vmatpush1.bf16.msra.mxu0 0
    %241 = vmatprep.mubr.bf16.mxu0 0
    %242 = vmatmul.mubr.bf16.gmra.mrb[0].mxu0 %v204
    %v243 = vpop.f32.mrb[0].mxu0
    %v244 = vadd.f32 0.0, %v243
    %v245 = vpop.f32.mrb[0].mxu0
    %v246 = vpop.f32.mrb[0].mxu0
    %v247 = vadd.f32 0.0, %v246
    %v248 = vpop.f32.mrb[0].mxu0
    %249 = vdwg.mxu0
    %v251 = vsel %vm34, %v197, 0
    %v254 = vsel %vm38, %v198, 0
    %256 = vmatprep.subr.bf16.mxu0 0
    %257 = vmatpush1.bf16.msra.mxu0 %v254
    %258 = vmatprep.subr.bf16.mxu0 0
    %259 = vmatpush1.bf16.msra.mxu0 0
    %260 = vmatprep.subr.bf16.mxu0 0
    %261 = vmatpush1.bf16.msra.mxu0 0
    %262 = vmatprep.subr.bf16.mxu0 0
    %263 = vmatpush1.bf16.msra.mxu0 0
    %264 = vmatprep.subr.bf16.mxu0 0
    %265 = vmatpush1.bf16.msra.mxu0 0
    %266 = vmatprep.subr.bf16.mxu0 0
    %267 = vmatpush1.bf16.msra.mxu0 0
    %268 = vmatprep.subr.bf16.mxu0 0
    %269 = vmatpush1.bf16.msra.mxu0 0
    %270 = vmatprep.subr.bf16.mxu0 0
    %271 = vmatpush1.bf16.msra.mxu0 0
    %272 = vmatprep.subr.bf16.mxu0 0
    %273 = vmatpush1.bf16.msra.mxu0 0
    %274 = vmatprep.subr.bf16.mxu0 0
    %275 = vmatpush1.bf16.msra.mxu0 0
    %276 = vmatprep.subr.bf16.mxu0 0
    %277 = vmatpush1.bf16.msra.mxu0 0
    %278 = vmatprep.subr.bf16.mxu0 0
    %279 = vmatpush1.bf16.msra.mxu0 0
    %280 = vmatprep.subr.bf16.mxu0 0
    %281 = vmatpush1.bf16.msra.mxu0 0
    %282 = vmatprep.subr.bf16.mxu0 0
    %283 = vmatpush1.bf16.msra.mxu0 0
    %284 = vmatprep.subr.bf16.mxu0 0
    %285 = vmatpush1.bf16.msra.mxu0 0
    %286 = vmatprep.subr.bf16.mxu0 0
    %287 = vmatpush1.bf16.msra.mxu0 0
    %288 = vmatprep.mubr.bf16.mxu0 0
    %289 = vmatmul.mubr.bf16.gmra.mrb[0].mxu0 %v251
    %v290 = vpop.f32.mrb[0].mxu0
    %v291 = vadd.f32 %v244, %v290
    %v292 = vpop.f32.mrb[0].mxu0
    %v293 = vpop.f32.mrb[0].mxu0
    %v294 = vadd.f32 %v247, %v293
    %v295 = vpop.f32.mrb[0].mxu0
    %296 = vdwg.mxu0
    %v297 = vld [vmem:[%s0 + $0x1a] sm:$0xff]
    %v298 = vld [vmem:[%s0 + $0x22] sm:$0xff]
    %v299 = vpack.c.bf16 %v298, %v297
    %v300 = vld [vmem:[%s133] sm:$0xf]
    %v302 = vsel %vm34, %v299, 0
    %v305 = vsel %vm38, %v300, 0
    %307 = vmatprep.subr.bf16.mxu0 0
    %308 = vmatpush1.bf16.msra.mxu0 %v305
    %309 = vmatprep.subr.bf16.mxu0 0
    %310 = vmatpush1.bf16.msra.mxu0 0
    %311 = vmatprep.subr.bf16.mxu0 0
    %312 = vmatpush1.bf16.msra.mxu0 0
    %313 = vmatprep.subr.bf16.mxu0 0
    %314 = vmatpush1.bf16.msra.mxu0 0
    %315 = vmatprep.subr.bf16.mxu0 0
    %316 = vmatpush1.bf16.msra.mxu0 0
    %317 = vmatprep.subr.bf16.mxu0 0
    %318 = vmatpush1.bf16.msra.mxu0 0
    %319 = vmatprep.subr.bf16.mxu0 0
    %320 = vmatpush1.bf16.msra.mxu0 0
    %321 = vmatprep.subr.bf16.mxu0 0
    %322 = vmatpush1.bf16.msra.mxu0 0
    %323 = vmatprep.subr.bf16.mxu0 0
    %324 = vmatpush1.bf16.msra.mxu0 0
    %325 = vmatprep.subr.bf16.mxu0 0
    %326 = vmatpush1.bf16.msra.mxu0 0
    %327 = vmatprep.subr.bf16.mxu0 0
    %328 = vmatpush1.bf16.msra.mxu0 0
    %329 = vmatprep.subr.bf16.mxu0 0
    %330 = vmatpush1.bf16.msra.mxu0 0
    %331 = vmatprep.subr.bf16.mxu0 0
    %332 = vmatpush1.bf16.msra.mxu0 0
    %333 = vmatprep.subr.bf16.mxu0 0
    %334 = vmatpush1.bf16.msra.mxu0 0
    %335 = vmatprep.subr.bf16.mxu0 0
    %336 = vmatpush1.bf16.msra.mxu0 0
    %337 = vmatprep.subr.bf16.mxu0 0
    %338 = vmatpush1.bf16.msra.mxu0 0
    %339 = vmatprep.mubr.bf16.mxu0 0
    %340 = vmatmul.mubr.bf16.gmra.mrb[0].mxu0 %v302
    %v341 = vpop.f32.mrb[0].mxu0
    %v342 = vadd.f32 0.0, %v341
    %v343 = vpop.f32.mrb[0].mxu0
    %v344 = vpop.f32.mrb[0].mxu0
    %v345 = vadd.f32 0.0, %v344
    %v346 = vpop.f32.mrb[0].mxu0
    %347 = vdwg.mxu0
    %v348 = vadd.f32 %v291, %v342
    %v349 = vadd.f32 %v294, %v345
    %v350 = vld [vmem:[%s5] sm:$0x1]
    %v351 = vlaneseq
    %v352 = vshrl.u32 %v351, 7
    %v353 = vsub.s32 0, %v352
    %v354 = vrot.slane %v350, %v353
    %v355 = vadd.f32 %v348, %v354
    %v356 = vadd.f32 %v349, %v354
    %v357 = vmax.f32 %v355, 0.0
    %v358 = vmax.f32 %v356, 0.0
    %359 = vst [vmem:[#allocation2 + $0x10] sm:$0xff] %v357
    %360 = vst [vmem:[#allocation2 + $0x18] sm:$0xff] %v358
    %v361 = vld [vmem:[#allocation2] ss:$2 sm:$0xff]
    %s362 = scalar_lea.vmem [#allocation2], 1
    %v363 = vld [vmem:[%s362] ss:$2 sm:$0xff]
    %v364 = vmax.f32 %v361, %v363
    %vm365 = vcmask 57344
    %366 = vst.msk [vmem:[#allocation3] sm:$0x1] %vm365, 0.0
    %367 = vst.msk [vmem:[#allocation3 + $0x9] sm:$0x1] %vm365, 0.0
    %368 = vst.msk [vmem:[#allocation3 + $0x1] sm:$0xff] %vm34, %v364
    %s369 = scalar_lea.vmem [#allocation2], 16
    %v370 = vld [vmem:[%s369] ss:$2 sm:$0xff]
    %s371 = scalar_lea.vmem [#allocation2], 17
    %v372 = vld [vmem:[%s371] ss:$2 sm:$0xff]
    %v373 = vmax.f32 %v370, %v372
    %374 = vst.msk [vmem:[#allocation3 + $0x10] sm:$0x1] %vm365, 0.0
    %375 = vst.msk [vmem:[#allocation3 + $0x19] sm:$0x1] %vm365, 0.0
    %376 = vst.msk [vmem:[#allocation3 + $0x11] sm:$0xff] %vm34, %v373
    %v377 = vld [vmem:[#allocation3] sm:$0xff]
    %v378 = vpack.c.bf16 %v377, %v377
    %v379 = vld [vmem:[%s2] sm:$0xf]
    %v380 = vld [vmem:[#allocation3 + $0x1] sm:$0xff]
    %v381 = vpack.c.bf16 %v380, %v380
    %s382 = scalar_lea.vmem %s2, 4
    %v383 = vld [vmem:[%s382] sm:$0xf]
    %v385 = vsel %vm34, %v381, 0
    %v388 = vsel %vm38, %v383, 0
    %390 = vmatprep.subr.bf16.mxu0 0
    %391 = vmatpush1.bf16.msra.mxu0 %v388
    %392 = vmatprep.subr.bf16.mxu0 0
    %393 = vmatpush1.bf16.msra.mxu0 0
    %394 = vmatprep.subr.bf16.mxu0 0
    %395 = vmatpush1.bf16.msra.mxu0 0
    %396 = vmatprep.subr.bf16.mxu0 0
    %397 = vmatpush1.bf16.msra.mxu0 0
    %398 = vmatprep.subr.bf16.mxu0 0
    %399 = vmatpush1.bf16.msra.mxu0 0
    %400 = vmatprep.subr.bf16.mxu0 0
    %401 = vmatpush1.bf16.msra.mxu0 0
    %402 = vmatprep.subr.bf16.mxu0 0
    %403 = vmatpush1.bf16.msra.mxu0 0
    %404 = vmatprep.subr.bf16.mxu0 0
    %405 = vmatpush1.bf16.msra.mxu0 0
    %406 = vmatprep.subr.bf16.mxu0 0
    %407 = vmatpush1.bf16.msra.mxu0 0
    %408 = vmatprep.subr.bf16.mxu0 0
    %409 = vmatpush1.bf16.msra.mxu0 0
    %410 = vmatprep.subr.bf16.mxu0 0
    %411 = vmatpush1.bf16.msra.mxu0 0
    %412 = vmatprep.subr.bf16.mxu0 0
    %413 = vmatpush1.bf16.msra.mxu0 0
    %414 = vmatprep.subr.bf16.mxu0 0
    %415 = vmatpush1.bf16.msra.mxu0 0
    %416 = vmatprep.subr.bf16.mxu0 0
    %417 = vmatpush1.bf16.msra.mxu0 0
    %418 = vmatprep.subr.bf16.mxu0 0
    %419 = vmatpush1.bf16.msra.mxu0 0
    %420 = vmatprep.subr.bf16.mxu0 0
    %421 = vmatpush1.bf16.msra.mxu0 0
    %422 = vmatprep.mubr.bf16.mxu0 0
    %423 = vmatmul.mubr.bf16.gmra.mrb[0].mxu0 %v385
    %v424 = vpop.f32.mrb[0].mxu0
    %v425 = vadd.f32 0.0, %v424
    %v426 = vpop.f32.mrb[0].mxu0
    %v427 = vpop.f32.mrb[0].mxu0
    %v428 = vpop.f32.mrb[0].mxu0
    %429 = vdwg.mxu0
    %v431 = vsel %vm34, %v378, 0
    %v434 = vsel %vm38, %v379, 0
    %436 = vmatprep.subr.bf16.mxu0 0
    %437 = vmatpush1.bf16.msra.mxu0 %v434
    %438 = vmatprep.subr.bf16.mxu0 0
    %439 = vmatpush1.bf16.msra.mxu0 0
    %440 = vmatprep.subr.bf16.mxu0 0
    %441 = vmatpush1.bf16.msra.mxu0 0
    %442 = vmatprep.subr.bf16.mxu0 0
    %443 = vmatpush1.bf16.msra.mxu0 0
    %444 = vmatprep.subr.bf16.mxu0 0
    %445 = vmatpush1.bf16.msra.mxu0 0
    %446 = vmatprep.subr.bf16.mxu0 0
    %447 = vmatpush1.bf16.msra.mxu0 0
    %448 = vmatprep.subr.bf16.mxu0 0
    %449 = vmatpush1.bf16.msra.mxu0 0
    %450 = vmatprep.subr.bf16.mxu0 0
    %451 = vmatpush1.bf16.msra.mxu0 0
    %452 = vmatprep.subr.bf16.mxu0 0
    %453 = vmatpush1.bf16.msra.mxu0 0
    %454 = vmatprep.subr.bf16.mxu0 0
    %455 = vmatpush1.bf16.msra.mxu0 0
    %456 = vmatprep.subr.bf16.mxu0 0
    %457 = vmatpush1.bf16.msra.mxu0 0
    %458 = vmatprep.subr.bf16.mxu0 0
    %459 = vmatpush1.bf16.msra.mxu0 0
    %460 = vmatprep.subr.bf16.mxu0 0
    %461 = vmatpush1.bf16.msra.mxu0 0
    %462 = vmatprep.subr.bf16.mxu0 0
    %463 = vmatpush1.bf16.msra.mxu0 0
    %464 = vmatprep.subr.bf16.mxu0 0
    %465 = vmatpush1.bf16.msra.mxu0 0
    %466 = vmatprep.subr.bf16.mxu0 0
    %467 = vmatpush1.bf16.msra.mxu0 0
    %468 = vmatprep.mubr.bf16.mxu0 0
    %469 = vmatmul.mubr.bf16.gmra.mrb[0].mxu0 %v431
    %v470 = vpop.f32.mrb[0].mxu0
    %v471 = vadd.f32 %v425, %v470
    %v472 = vpop.f32.mrb[0].mxu0
    %v473 = vpop.f32.mrb[0].mxu0
    %v474 = vpop.f32.mrb[0].mxu0
    %475 = vdwg.mxu0
    %v476 = vld [vmem:[#allocation3 + $0x2] sm:$0xff]
    %v477 = vpack.c.bf16 %v476, %v476
    %s478 = scalar_lea.vmem %s2, 8
    %v479 = vld [vmem:[%s478] sm:$0xf]
    %v481 = vsel %vm34, %v477, 0
    %v484 = vsel %vm38, %v479, 0
    %486 = vmatprep.subr.bf16.mxu0 0
    %487 = vmatpush1.bf16.msra.mxu0 %v484
    %488 = vmatprep.subr.bf16.mxu0 0
    %489 = vmatpush1.bf16.msra.mxu0 0
    %490 = vmatprep.subr.bf16.mxu0 0
    %491 = vmatpush1.bf16.msra.mxu0 0
    %492 = vmatprep.subr.bf16.mxu0 0
    %493 = vmatpush1.bf16.msra.mxu0 0
    %494 = vmatprep.subr.bf16.mxu0 0
    %495 = vmatpush1.bf16.msra.mxu0 0
    %496 = vmatprep.subr.bf16.mxu0 0
    %497 = vmatpush1.bf16.msra.mxu0 0
    %498 = vmatprep.subr.bf16.mxu0 0
    %499 = vmatpush1.bf16.msra.mxu0 0
    %500 = vmatprep.subr.bf16.mxu0 0
    %501 = vmatpush1.bf16.msra.mxu0 0
    %502 = vmatprep.subr.bf16.mxu0 0
    %503 = vmatpush1.bf16.msra.mxu0 0
    %504 = vmatprep.subr.bf16.mxu0 0
    %505 = vmatpush1.bf16.msra.mxu0 0
    %506 = vmatprep.subr.bf16.mxu0 0
    %507 = vmatpush1.bf16.msra.mxu0 0
    %508 = vmatprep.subr.bf16.mxu0 0
    %509 = vmatpush1.bf16.msra.mxu0 0
    %510 = vmatprep.subr.bf16.mxu0 0
    %511 = vmatpush1.bf16.msra.mxu0 0
    %512 = vmatprep.subr.bf16.mxu0 0
    %513 = vmatpush1.bf16.msra.mxu0 0
    %514 = vmatprep.subr.bf16.mxu0 0
    %515 = vmatpush1.bf16.msra.mxu0 0
    %516 = vmatprep.subr.bf16.mxu0 0
    %517 = vmatpush1.bf16.msra.mxu0 0
    %518 = vmatprep.mubr.bf16.mxu0 0
    %519 = vmatmul.mubr.bf16.gmra.mrb[0].mxu0 %v481
    %v520 = vpop.f32.mrb[0].mxu0
    %v521 = vadd.f32 0.0, %v520
    %v522 = vpop.f32.mrb[0].mxu0
    %v523 = vpop.f32.mrb[0].mxu0
    %v524 = vpop.f32.mrb[0].mxu0
    %525 = vdwg.mxu0
    %v526 = vadd.f32 %v471, %v521
    %v527 = vld [vmem:[%s5 + $0x1] sm:$0x1]
    %v528 = vlaneseq
    %v529 = vshrl.u32 %v528, 7
    %v530 = vsub.s32 0, %v529
    %v531 = vrot.slane %v527, %v530
    %v532 = vadd.f32 %v526, %v531
    %v533 = vmax.f32 %v532, 0.0
    %534 = vst [vmem:[#allocation4] sm:$0xff] %v533
    %v535 = vld [vmem:[#allocation3 + $0x10] sm:$0xff]
    %v536 = vpack.c.bf16 %v535, %v535
    %v537 = vld [vmem:[%s2] sm:$0xf]
    %v538 = vld [vmem:[#allocation3 + $0x11] sm:$0xff]
    %v539 = vpack.c.bf16 %v538, %v538
    %v540 = vld [vmem:[%s382] sm:$0xf]
    %v542 = vsel %vm34, %v539, 0
    %v545 = vsel %vm38, %v540, 0
    %547 = vmatprep.subr.bf16.mxu0 0
    %548 = vmatpush1.bf16.msra.mxu0 %v545
    %549 = vmatprep.subr.bf16.mxu0 0
    %550 = vmatpush1.bf16.msra.mxu0 0
    %551 = vmatprep.subr.bf16.mxu0 0
    %552 = vmatpush1.bf16.msra.mxu0 0
    %553 = vmatprep.subr.bf16.mxu0 0
    %554 = vmatpush1.bf16.msra.mxu0 0
    %555 = vmatprep.subr.bf16.mxu0 0
    %556 = vmatpush1.bf16.msra.mxu0 0
    %557 = vmatprep.subr.bf16.mxu0 0
    %558 = vmatpush1.bf16.msra.mxu0 0
    %559 = vmatprep.subr.bf16.mxu0 0
    %560 = vmatpush1.bf16.msra.mxu0 0
    %561 = vmatprep.subr.bf16.mxu0 0
    %562 = vmatpush1.bf16.msra.mxu0 0
    %563 = vmatprep.subr.bf16.mxu0 0
    %564 = vmatpush1.bf16.msra.mxu0 0
    %565 = vmatprep.subr.bf16.mxu0 0
    %566 = vmatpush1.bf16.msra.mxu0 0
    %567 = vmatprep.subr.bf16.mxu0 0
    %568 = vmatpush1.bf16.msra.mxu0 0
    %569 = vmatprep.subr.bf16.mxu0 0
    %570 = vmatpush1.bf16.msra.mxu0 0
    %571 = vmatprep.subr.bf16.mxu0 0
    %572 = vmatpush1.bf16.msra.mxu0 0
    %573 = vmatprep.subr.bf16.mxu0 0
    %574 = vmatpush1.bf16.msra.mxu0 0
    %575 = vmatprep.subr.bf16.mxu0 0
    %576 = vmatpush1.bf16.msra.mxu0 0
    %577 = vmatprep.subr.bf16.mxu0 0
    %578 = vmatpush1.bf16.msra.mxu0 0
    %579 = vmatprep.mubr.bf16.mxu0 0
    %580 = vmatmul.mubr.bf16.gmra.mrb[0].mxu0 %v542
    %v581 = vpop.f32.mrb[0].mxu0
    %v582 = vadd.f32 0.0, %v581
    %v583 = vpop.f32.mrb[0].mxu0
    %v584 = vpop.f32.mrb[0].mxu0
    %v585 = vpop.f32.mrb[0].mxu0
    %586 = vdwg.mxu0
    %v588 = vsel %vm34, %v536, 0
    %v591 = vsel %vm38, %v537, 0
    %593 = vmatprep.subr.bf16.mxu0 0
    %594 = vmatpush1.bf16.msra.mxu0 %v591
    %595 = vmatprep.subr.bf16.mxu0 0
    %596 = vmatpush1.bf16.msra.mxu0 0
    %597 = vmatprep.subr.bf16.mxu0 0
    %598 = vmatpush1.bf16.msra.mxu0 0
    %599 = vmatprep.subr.bf16.mxu0 0
    %600 = vmatpush1.bf16.msra.mxu0 0
    %601 = vmatprep.subr.bf16.mxu0 0
    %602 = vmatpush1.bf16.msra.mxu0 0
    %603 = vmatprep.subr.bf16.mxu0 0
    %604 = vmatpush1.bf16.msra.mxu0 0
    %605 = vmatprep.subr.bf16.mxu0 0
    %606 = vmatpush1.bf16.msra.mxu0 0
    %607 = vmatprep.subr.bf16.mxu0 0
    %608 = vmatpush1.bf16.msra.mxu0 0
    %609 = vmatprep.subr.bf16.mxu0 0
    %610 = vmatpush1.bf16.msra.mxu0 0
    %611 = vmatprep.subr.bf16.mxu0 0
    %612 = vmatpush1.bf16.msra.mxu0 0
    %613 = vmatprep.subr.bf16.mxu0 0
    %614 = vmatpush1.bf16.msra.mxu0 0
    %615 = vmatprep.subr.bf16.mxu0 0
    %616 = vmatpush1.bf16.msra.mxu0 0
    %617 = vmatprep.subr.bf16.mxu0 0
    %618 = vmatpush1.bf16.msra.mxu0 0
    %619 = vmatprep.subr.bf16.mxu0 0
    %620 = vmatpush1.bf16.msra.mxu0 0
    %621 = vmatprep.subr.bf16.mxu0 0
    %622 = vmatpush1.bf16.msra.mxu0 0
    %623 = vmatprep.subr.bf16.mxu0 0
    %624 = vmatpush1.bf16.msra.mxu0 0
    %625 = vmatprep.mubr.bf16.mxu0 0
    %626 = vmatmul.mubr.bf16.gmra.mrb[0].mxu0 %v588
    %v627 = vpop.f32.mrb[0].mxu0
    %v628 = vadd.f32 %v582, %v627
    %v629 = vpop.f32.mrb[0].mxu0
    %v630 = vpop.f32.mrb[0].mxu0
    %v631 = vpop.f32.mrb[0].mxu0
    %632 = vdwg.mxu0
    %v633 = vld [vmem:[#allocation3 + $0x12] sm:$0xff]
    %v634 = vpack.c.bf16 %v633, %v633
    %v635 = vld [vmem:[%s478] sm:$0xf]
    %v637 = vsel %vm34, %v634, 0
    %v640 = vsel %vm38, %v635, 0
    %642 = vmatprep.subr.bf16.mxu0 0
    %643 = vmatpush1.bf16.msra.mxu0 %v640
    %644 = vmatprep.subr.bf16.mxu0 0
    %645 = vmatpush1.bf16.msra.mxu0 0
    %646 = vmatprep.subr.bf16.mxu0 0
    %647 = vmatpush1.bf16.msra.mxu0 0
    %648 = vmatprep.subr.bf16.mxu0 0
    %649 = vmatpush1.bf16.msra.mxu0 0
    %650 = vmatprep.subr.bf16.mxu0 0
    %651 = vmatpush1.bf16.msra.mxu0 0
    %652 = vmatprep.subr.bf16.mxu0 0
    %653 = vmatpush1.bf16.msra.mxu0 0
    %654 = vmatprep.subr.bf16.mxu0 0
    %655 = vmatpush1.bf16.msra.mxu0 0
    %656 = vmatprep.subr.bf16.mxu0 0
    %657 = vmatpush1.bf16.msra.mxu0 0
    %658 = vmatprep.subr.bf16.mxu0 0
    %659 = vmatpush1.bf16.msra.mxu0 0
    %660 = vmatprep.subr.bf16.mxu0 0
    %661 = vmatpush1.bf16.msra.mxu0 0
    %662 = vmatprep.subr.bf16.mxu0 0
    %663 = vmatpush1.bf16.msra.mxu0 0
    %664 = vmatprep.subr.bf16.mxu0 0
    %665 = vmatpush1.bf16.msra.mxu0 0
    %666 = vmatprep.subr.bf16.mxu0 0
    %667 = vmatpush1.bf16.msra.mxu0 0
    %668 = vmatprep.subr.bf16.mxu0 0
    %669 = vmatpush1.bf16.msra.mxu0 0
    %670 = vmatprep.subr.bf16.mxu0 0
    %671 = vmatpush1.bf16.msra.mxu0 0
    %672 = vmatprep.subr.bf16.mxu0 0
    %673 = vmatpush1.bf16.msra.mxu0 0
    %674 = vmatprep.mubr.bf16.mxu0 0
    %675 = vmatmul.mubr.bf16.gmra.mrb[0].mxu0 %v637
    %v676 = vpop.f32.mrb[0].mxu0
    %v677 = vadd.f32 0.0, %v676
    %v678 = vpop.f32.mrb[0].mxu0
    %v679 = vpop.f32.mrb[0].mxu0
    %v680 = vpop.f32.mrb[0].mxu0
    %681 = vdwg.mxu0
    %v682 = vadd.f32 %v628, %v677
    %v683 = vld [vmem:[%s5 + $0x1] sm:$0x1]
    %v684 = vlaneseq
    %v685 = vshrl.u32 %v684, 7
    %v686 = vsub.s32 0, %v685
    %v687 = vrot.slane %v683, %v686
    %v688 = vadd.f32 %v682, %v687
    %v689 = vmax.f32 %v688, 0.0
    %690 = vst [vmem:[#allocation4 + $0x8] sm:$0xff] %v689
    %v691 = vld [vmem:[#allocation4] ss:$2 sm:$0xf]
    %s692 = scalar_lea.vmem [#allocation4], 1
    %v693 = vld [vmem:[%s692] ss:$2 sm:$0xf]
    %v694 = vmax.f32 %v691, %v693
    %vm695 = vcmask 60416
    %696 = vst.msk [vmem:[#allocation5] sm:$0xf] %vm695, %v694
    %s697 = scalar_lea.vmem [#allocation4], 8
    %v698 = vld [vmem:[%s697] ss:$2 sm:$0xf]
    %s699 = scalar_lea.vmem [#allocation4], 9
    %v700 = vld [vmem:[%s699] ss:$2 sm:$0xf]
    %v701 = vmax.f32 %v698, %v700
    %702 = vst.msk [vmem:[#allocation5 + $0x4] sm:$0xf] %vm695, %v701
    %v703 = vld [vmem:[#allocation5] ss:$4 sm:$0x3]
    %v704 = vpack.c.bf16 %v703, %v703
    %v705 = vld [vmem:[%s3] sm:$0xf]
    %s706 = scalar_lea.vmem [#allocation5], 1
    %v707 = vld [vmem:[%s706] ss:$4 sm:$0x3]
    %v708 = vpack.c.bf16 %v707, %v707
    %s709 = scalar_lea.vmem %s3, 4
    %v710 = vld [vmem:[%s709] sm:$0xf]
    %v712 = vsel %vm34, %v708, 0
    %v715 = vsel %vm38, %v710, 0
    %717 = vmatprep.subr.bf16.mxu0 0
    %718 = vmatpush1.bf16.msra.mxu0 %v715
    %719 = vmatprep.subr.bf16.mxu0 0
    %720 = vmatpush1.bf16.msra.mxu0 0
    %721 = vmatprep.subr.bf16.mxu0 0
    %722 = vmatpush1.bf16.msra.mxu0 0
    %723 = vmatprep.subr.bf16.mxu0 0
    %724 = vmatpush1.bf16.msra.mxu0 0
    %725 = vmatprep.subr.bf16.mxu0 0
    %726 = vmatpush1.bf16.msra.mxu0 0
    %727 = vmatprep.subr.bf16.mxu0 0
    %728 = vmatpush1.bf16.msra.mxu0 0
    %729 = vmatprep.subr.bf16.mxu0 0
    %730 = vmatpush1.bf16.msra.mxu0 0
    %731 = vmatprep.subr.bf16.mxu0 0
    %732 = vmatpush1.bf16.msra.mxu0 0
    %733 = vmatprep.subr.bf16.mxu0 0
    %734 = vmatpush1.bf16.msra.mxu0 0
    %735 = vmatprep.subr.bf16.mxu0 0
    %736 = vmatpush1.bf16.msra.mxu0 0
    %737 = vmatprep.subr.bf16.mxu0 0
    %738 = vmatpush1.bf16.msra.mxu0 0
    %739 = vmatprep.subr.bf16.mxu0 0
    %740 = vmatpush1.bf16.msra.mxu0 0
    %741 = vmatprep.subr.bf16.mxu0 0
    %742 = vmatpush1.bf16.msra.mxu0 0
    %743 = vmatprep.subr.bf16.mxu0 0
    %744 = vmatpush1.bf16.msra.mxu0 0
    %745 = vmatprep.subr.bf16.mxu0 0
    %746 = vmatpush1.bf16.msra.mxu0 0
    %747 = vmatprep.subr.bf16.mxu0 0
    %748 = vmatpush1.bf16.msra.mxu0 0
    %749 = vmatprep.mubr.bf16.mxu0 0
    %750 = vmatmul.mubr.bf16.gmra.mrb[0].mxu0 %v712
    %v751 = vpop.f32.mrb[0].mxu0
    %v752 = vadd.f32 0.0, %v751
    %v753 = vpop.f32.mrb[0].mxu0
    %v754 = vpop.f32.mrb[0].mxu0
    %v755 = vpop.f32.mrb[0].mxu0
    %756 = vdwg.mxu0
    %v758 = vsel %vm34, %v704, 0
    %v761 = vsel %vm38, %v705, 0
    %763 = vmatprep.subr.bf16.mxu0 0
    %764 = vmatpush1.bf16.msra.mxu0 %v761
    %765 = vmatprep.subr.bf16.mxu0 0
    %766 = vmatpush1.bf16.msra.mxu0 0
    %767 = vmatprep.subr.bf16.mxu0 0
    %768 = vmatpush1.bf16.msra.mxu0 0
    %769 = vmatprep.subr.bf16.mxu0 0
    %770 = vmatpush1.bf16.msra.mxu0 0
    %771 = vmatprep.subr.bf16.mxu0 0
    %772 = vmatpush1.bf16.msra.mxu0 0
    %773 = vmatprep.subr.bf16.mxu0 0
    %774 = vmatpush1.bf16.msra.mxu0 0
    %775 = vmatprep.subr.bf16.mxu0 0
    %776 = vmatpush1.bf16.msra.mxu0 0
    %777 = vmatprep.subr.bf16.mxu0 0
    %778 = vmatpush1.bf16.msra.mxu0 0
    %779 = vmatprep.subr.bf16.mxu0 0
    %780 = vmatpush1.bf16.msra.mxu0 0
    %781 = vmatprep.subr.bf16.mxu0 0
    %782 = vmatpush1.bf16.msra.mxu0 0
    %783 = vmatprep.subr.bf16.mxu0 0
    %784 = vmatpush1.bf16.msra.mxu0 0
    %785 = vmatprep.subr.bf16.mxu0 0
    %786 = vmatpush1.bf16.msra.mxu0 0
    %787 = vmatprep.subr.bf16.mxu0 0
    %788 = vmatpush1.bf16.msra.mxu0 0
    %789 = vmatprep.subr.bf16.mxu0 0
    %790 = vmatpush1.bf16.msra.mxu0 0
    %791 = vmatprep.subr.bf16.mxu0 0
    %792 = vmatpush1.bf16.msra.mxu0 0
    %793 = vmatprep.subr.bf16.mxu0 0
    %794 = vmatpush1.bf16.msra.mxu0 0
    %795 = vmatprep.mubr.bf16.mxu0 0
    %796 = vmatmul.mubr.bf16.gmra.mrb[0].mxu0 %v758
    %v797 = vpop.f32.mrb[0].mxu0
    %v798 = vadd.f32 %v752, %v797
    %v799 = vpop.f32.mrb[0].mxu0
    %v800 = vpop.f32.mrb[0].mxu0
    %v801 = vpop.f32.mrb[0].mxu0
    %802 = vdwg.mxu0
    %s803 = scalar_lea.vmem [#allocation5], 2
    %v804 = vld [vmem:[%s803] ss:$4 sm:$0x3]
    %v805 = vpack.c.bf16 %v804, %v804
    %s806 = scalar_lea.vmem %s3, 8
    %v807 = vld [vmem:[%s806] sm:$0xf]
    %v809 = vsel %vm34, %v805, 0
    %v812 = vsel %vm38, %v807, 0
    %814 = vmatprep.subr.bf16.mxu0 0
    %815 = vmatpush1.bf16.msra.mxu0 %v812
    %816 = vmatprep.subr.bf16.mxu0 0
    %817 = vmatpush1.bf16.msra.mxu0 0
    %818 = vmatprep.subr.bf16.mxu0 0
    %819 = vmatpush1.bf16.msra.mxu0 0
    %820 = vmatprep.subr.bf16.mxu0 0
    %821 = vmatpush1.bf16.msra.mxu0 0
    %822 = vmatprep.subr.bf16.mxu0 0
    %823 = vmatpush1.bf16.msra.mxu0 0
    %824 = vmatprep.subr.bf16.mxu0 0
    %825 = vmatpush1.bf16.msra.mxu0 0
    %826 = vmatprep.subr.bf16.mxu0 0
    %827 = vmatpush1.bf16.msra.mxu0 0
    %828 = vmatprep.subr.bf16.mxu0 0
    %829 = vmatpush1.bf16.msra.mxu0 0
    %830 = vmatprep.subr.bf16.mxu0 0
    %831 = vmatpush1.bf16.msra.mxu0 0
    %832 = vmatprep.subr.bf16.mxu0 0
    %833 = vmatpush1.bf16.msra.mxu0 0
    %834 = vmatprep.subr.bf16.mxu0 0
    %835 = vmatpush1.bf16.msra.mxu0 0
    %836 = vmatprep.subr.bf16.mxu0 0
    %837 = vmatpush1.bf16.msra.mxu0 0
    %838 = vmatprep.subr.bf16.mxu0 0
    %839 = vmatpush1.bf16.msra.mxu0 0
    %840 = vmatprep.subr.bf16.mxu0 0
    %841 = vmatpush1.bf16.msra.mxu0 0
    %842 = vmatprep.subr.bf16.mxu0 0
    %843 = vmatpush1.bf16.msra.mxu0 0
    %844 = vmatprep.subr.bf16.mxu0 0
    %845 = vmatpush1.bf16.msra.mxu0 0
    %846 = vmatprep.mubr.bf16.mxu0 0
    %847 = vmatmul.mubr.bf16.gmra.mrb[0].mxu0 %v809
    %v848 = vpop.f32.mrb[0].mxu0
    %v849 = vadd.f32 0.0, %v848
    %v850 = vpop.f32.mrb[0].mxu0
    %v851 = vpop.f32.mrb[0].mxu0
    %v852 = vpop.f32.mrb[0].mxu0
    %853 = vdwg.mxu0
    %v854 = vadd.f32 %v798, %v849
    %s855 = scalar_lea.vmem [#allocation5], 3
    %v856 = vld [vmem:[%s855] ss:$4 sm:$0x3]
    %v857 = vpack.c.bf16 %v856, %v856
    %s858 = scalar_lea.vmem %s3, 12
    %v859 = vld [vmem:[%s858] sm:$0xf]
    %v861 = vsel %vm34, %v857, 0
    %v864 = vsel %vm38, %v859, 0
    %866 = vmatprep.subr.bf16.mxu0 0
    %867 = vmatpush1.bf16.msra.mxu0 %v864
    %868 = vmatprep.subr.bf16.mxu0 0
    %869 = vmatpush1.bf16.msra.mxu0 0
    %870 = vmatprep.subr.bf16.mxu0 0
    %871 = vmatpush1.bf16.msra.mxu0 0
    %872 = vmatprep.subr.bf16.mxu0 0
    %873 = vmatpush1.bf16.msra.mxu0 0
    %874 = vmatprep.subr.bf16.mxu0 0
    %875 = vmatpush1.bf16.msra.mxu0 0
    %876 = vmatprep.subr.bf16.mxu0 0
    %877 = vmatpush1.bf16.msra.mxu0 0
    %878 = vmatprep.subr.bf16.mxu0 0
    %879 = vmatpush1.bf16.msra.mxu0 0
    %880 = vmatprep.subr.bf16.mxu0 0
    %881 = vmatpush1.bf16.msra.mxu0 0
    %882 = vmatprep.subr.bf16.mxu0 0
    %883 = vmatpush1.bf16.msra.mxu0 0
    %884 = vmatprep.subr.bf16.mxu0 0
    %885 = vmatpush1.bf16.msra.mxu0 0
    %886 = vmatprep.subr.bf16.mxu0 0
    %887 = vmatpush1.bf16.msra.mxu0 0
    %888 = vmatprep.subr.bf16.mxu0 0
    %889 = vmatpush1.bf16.msra.mxu0 0
    %890 = vmatprep.subr.bf16.mxu0 0
    %891 = vmatpush1.bf16.msra.mxu0 0
    %892 = vmatprep.subr.bf16.mxu0 0
    %893 = vmatpush1.bf16.msra.mxu0 0
    %894 = vmatprep.subr.bf16.mxu0 0
    %895 = vmatpush1.bf16.msra.mxu0 0
    %896 = vmatprep.subr.bf16.mxu0 0
    %897 = vmatpush1.bf16.msra.mxu0 0
    %898 = vmatprep.mubr.bf16.mxu0 0
    %899 = vmatmul.mubr.bf16.gmra.mrb[0].mxu0 %v861
    %v900 = vpop.f32.mrb[0].mxu0
    %v901 = vadd.f32 0.0, %v900
    %v902 = vpop.f32.mrb[0].mxu0
    %v903 = vpop.f32.mrb[0].mxu0
    %v904 = vpop.f32.mrb[0].mxu0
    %905 = vdwg.mxu0
    %v906 = vadd.f32 %v854, %v901
    %v907 = vld [vmem:[%s5 + $0x2] sm:$0x1]
    %v908 = vlaneseq
    %v909 = vshrl.u32 %v908, 7
    %v910 = vsub.s32 0, %v909
    %v911 = vrot.slane %v907, %v910
    %v912 = vadd.f32 %v906, %v911
    %v913 = vmax.f32 %v912, 0.0
    %v914 = vpack.c.bf16 %v913, %v913
    %v915 = vld [vmem:[%s4] sm:$0xf]
    %v916 = vld [vmem:[%s4 + $0x4] sm:$0xf]
    %v917 = vld [vmem:[%s4 + $0x8] sm:$0xf]
    %v918 = vld [vmem:[%s4 + $0xc] sm:$0xf]
    %v919 = vld [vmem:[%s5 + $0x3] sm:$0x1]
    %v920 = vlaneseq
    %v921 = vshrl.u32 %v920, 7
    %v922 = vsub.s32 0, %v921
    %v923 = vrot.slane %v919, %v922
    %v928 = vunpack.c.l.b16 %v915
    %v929 = vunpack.c.l.b16 %v916
    %v930 = vunpack.c.l.b16 %v917
    %v931 = vunpack.c.l.b16 %v918
    %v932 = vpack.c.b16 %v929, %v928
    %v933 = vpack.c.b16 %v931, %v930
    %vm936 = vcmask 261120
    %v938 = vsel %vm936, %v914, 0
    %940 = vmatprep.subr.bf16.mxu0 0
    %941 = vmatpush1.bf16.msra.mxu0 %v932
    %942 = vmatprep.subr.bf16.mxu0 0
    %943 = vmatpush1.bf16.msra.mxu0 %v933
    %944 = vmatprep.subr.bf16.mxu0 0
    %945 = vmatpush1.bf16.msra.mxu0 0
    %946 = vmatprep.subr.bf16.mxu0 0
    %947 = vmatpush1.bf16.msra.mxu0 0
    %948 = vmatprep.subr.bf16.mxu0 0
    %949 = vmatpush1.bf16.msra.mxu0 0
    %950 = vmatprep.subr.bf16.mxu0 0
    %951 = vmatpush1.bf16.msra.mxu0 0
    %952 = vmatprep.subr.bf16.mxu0 0
    %953 = vmatpush1.bf16.msra.mxu0 0
    %954 = vmatprep.subr.bf16.mxu0 0
    %955 = vmatpush1.bf16.msra.mxu0 0
    %956 = vmatprep.subr.bf16.mxu0 0
    %957 = vmatpush1.bf16.msra.mxu0 0
    %958 = vmatprep.subr.bf16.mxu0 0
    %959 = vmatpush1.bf16.msra.mxu0 0
    %960 = vmatprep.subr.bf16.mxu0 0
    %961 = vmatpush1.bf16.msra.mxu0 0
    %962 = vmatprep.subr.bf16.mxu0 0
    %963 = vmatpush1.bf16.msra.mxu0 0
    %964 = vmatprep.subr.bf16.mxu0 0
    %965 = vmatpush1.bf16.msra.mxu0 0
    %966 = vmatprep.subr.bf16.mxu0 0
    %967 = vmatpush1.bf16.msra.mxu0 0
    %968 = vmatprep.subr.bf16.mxu0 0
    %969 = vmatpush1.bf16.msra.mxu0 0
    %970 = vmatprep.subr.bf16.mxu0 0
    %971 = vmatpush1.bf16.msra.mxu0 0
    %972 = vmatprep.mubr.bf16.mxu0 0
    %973 = vmatmul.mubr.bf16.gmra.mrb[0].mxu0 %v938
    %v974 = vpop.f32.mrb[0].mxu0
    %v975 = vadd.f32 %v923, %v974
    %v976 = vpop.f32.mrb[0].mxu0
    %v977 = vpop.f32.mrb[0].mxu0
    %v978 = vpop.f32.mrb[0].mxu0
    %979 = vdwg.mxu0
    %v980 = vtanh.pop %v975
    %981 = vst [vmem:[#allocation6] sm:$0x3] %v980
    // Predicated region
    $region26: #{conv1d_forward.1} parent=1 // pred_check
      _
    $region27: #{conv1d_forward.1} parent=1 // pred_check_branch
      %983 = sbr.rel (0) target = $region29
    $region28: #{conv1d_forward.1} parent=1 // pred_region
      %s985 = ssub.s32 32, 32
      %986 = vsyncadd [#allocation7], %s985
      %s988 = sshll.u32 [#allocation6], 4
      %s989 = int_to_ptr.vmem [resolvable:$true] %s988
      %991 = dma.vmem_to_hbm [thread:$0]  %s989, 32, %s6, [#allocation7]
    $region29: #{conv1d_forward.1} parent=1 // pred_fallthru
      _
    // Predicated region
    $region30: #{conv1d_forward.1} parent=1 // pred_check
      _
    $region31: #{conv1d_forward.1} parent=1 // pred_check_branch
      %993 = sbr.rel (0) target = $region33
    $region32: #{conv1d_forward.1} parent=1 // pred_region
      %994 = dma.done [#allocation7], 32
    $region33: #{conv1d_forward.1} parent=1 // pred_fallthru
      _
    %995 = vsyncpa [#allocation7], 1

</llo_original>
